<compile_context>
chip_gen: v5e
topology: v5e:2x2
jax: 0.10.0
libtpu: 0.0.40
codegen_flags: <defaults>
</compile_context>

<pallas_src>
import jax
import jax.numpy as jnp
from jax.experimental import pallas as pl
from jax.experimental.pallas import tpu as pltpu

K_IN = 470     # input features (contraction handled at 470; Mosaic pads K)
H1 = 512
H2 = 64
TB_MAX = 1024  # max batch-tile rows


def _round_up(x, m):
    return (x + m - 1) // m * m


def mlp_kernel(x_ref, w1_ref, b1_ref, w2_ref, b2_ref, w3_ref, b3_ref, o_ref):
    # x_ref: (tb, 470) f32/bf16 | w1: (470, 512) bf16 | b1: (1, 512) f32
    # w2: (512, 64) bf16        | b2: (1, 64) f32     | w3: (1, 64) f32
    # b3: (1, 1) f32 in SMEM    | o_ref: (tb, 1) f32
    x_bf = x_ref[...].astype(jnp.bfloat16)          # in-kernel cast (item 1)

    h1 = jnp.dot(x_bf, w1_ref[...], preferred_element_type=jnp.float32)
    h1 = jnp.maximum(h1 + b1_ref[...], 0.0)

    h2 = jnp.dot(h1.astype(jnp.bfloat16), w2_ref[...],
                 preferred_element_type=jnp.float32)
    h2 = jnp.maximum(h2 + b2_ref[...], 0.0)

    # Final (.., 64) @ (64, 1): VPU multiply + lane reduce instead of the MXU.
    out = jnp.sum(h2 * w3_ref[...], axis=-1, keepdims=True) + b3_ref[0, 0]
    o_ref[...] = out.astype(o_ref.dtype)


def _choose_tiling(batch):
    """Pick (tile_rows, num_tiles). Tiles are multiples of 16 rows, capped at
    TB_MAX, balanced, and there are >=2 of them whenever batch > 32 so both
    v7x TensorCores get work.  num_tiles = cdiv(batch, tb) so no tile is fully
    out of bounds (the last one may be partially OOB; Pallas pads the reads)."""
    if batch <= 32:
        tb = _round_up(batch, 16)
    else:
        nt_target = max(2, pl.cdiv(batch, TB_MAX))
        tb = min(TB_MAX, _round_up(pl.cdiv(batch, nt_target), 16))
    num_tiles = pl.cdiv(batch, tb)
    return tb, num_tiles


def simple_linear_forward(x, prepared_params):
    w1_p, b1, w2_p, b2, w3_row, b3 = prepared_params
    B = x.shape[0]
    tb, num_tiles = _choose_tiling(B)
    b_pad = num_tiles * tb

    flops = 2 * b_pad * (K_IN * H1 + H1 * H2 + H2)
    bytes_accessed = (
        (w1_p.size + w2_p.size) * 2                        # bf16 weights
        + (b1.size + b2.size + w3_row.size + b3.size) * 4  # f32 constants
        + x.size * x.dtype.itemsize                        # x read once, as-is
        + b_pad * 4)                                       # f32 output
    cost = pl.CostEstimate(flops=flops, transcendentals=0,
                           bytes_accessed=bytes_accessed)

    out = pl.pallas_call(
        mlp_kernel,
        out_shape=jax.ShapeDtypeStruct((b_pad, 1), jnp.float32),
        grid=(num_tiles,),
        in_specs=[
            pl.BlockSpec((tb, K_IN), lambda i: (i, 0)),          # x tiles pipeline
            pl.BlockSpec(w1_p.shape, lambda i: (0, 0)),          # VMEM-resident
            pl.BlockSpec(b1.shape, lambda i: (0, 0)),
            pl.BlockSpec(w2_p.shape, lambda i: (0, 0)),
            pl.BlockSpec(b2.shape, lambda i: (0, 0)),
            pl.BlockSpec(w3_row.shape, lambda i: (0, 0)),
            pl.BlockSpec(memory_space=pltpu.MemorySpace.SMEM),   # b3 scalar
        ],
        out_specs=pl.BlockSpec((tb, 1), lambda i: (i, 0)),
        compiler_params=pltpu.CompilerParams(
            dimension_semantics=("parallel",),
            vmem_limit_bytes=32 * 1024 * 1024),
        cost_estimate=cost,
    )(x, w1_p, b1, w2_p, b2, w3_row, b3)
    return out[:B]


def init_params(key):
    # Mirrors init_weights: weights ~ N(0, 0.1); biases at PyTorch's default
    # uniform(-1/sqrt(fan_in), 1/sqrt(fan_in)).
    k1, k2, k3, kb1, kb2, kb3 = jax.random.split(key, 6)

    def lin(kw, kb, fan_in, fan_out):
        w = 0.1 * jax.random.normal(kw, (fan_in, fan_out), dtype=jnp.float32)
        bound = 1.0 / jnp.sqrt(fan_in)
        b = jax.random.uniform(kb, (1, fan_out), minval=-bound, maxval=bound,
                               dtype=jnp.float32)
        return w, b

    w1, b1 = lin(k1, kb1, K_IN, H1)
    w2, b2 = lin(k2, kb2, H1, H2)
    w3, b3 = lin(k3, kb3, H2, 1)
    return (w1, b1, w2, b2, w3, b3)


def prepare_params(params):
    """Host-side, one-time: cast the two big weights to bf16 (MXU feed) and
    reshape w3 to a (1, 64) row for the in-kernel lane reduce.  No K padding —
    the kernel contracts over 470 directly."""
    w1, b1, w2, b2, w3, b3 = params
    w1_p = w1.astype(jnp.bfloat16)     # (470, 512)
    w2_p = w2.astype(jnp.bfloat16)     # (512, 64)
    w3_row = w3.T                      # (1, 64) f32 (tiny; full precision)
    return (w1_p, b1, w2_p, b2, w3_row, b3)


if __name__ == "__main__":
    key = jax.random.PRNGKey(0)
    kx, kp = jax.random.split(key)
    B = 64   # exercises the 2-tile "parallel" grid path with no OOB rows
    x = jax.random.normal(kx, (B, K_IN), dtype=jnp.float32)
    params = init_params(kp)
    prepared = prepare_params(params)

    fwd = jax.jit(simple_linear_forward)
    out = jax.block_until_ready(fwd(x, prepared))

    # Reference with the same bf16-rounded matmul operands (f32 math), so the
    # check isolates kernel correctness from the intentional bf16 quantization.
    w1, b1, w2, b2, w3, b3 = params
    x_bf = x.astype(jnp.bfloat16).astype(jnp.float32)
    w1_bf = w1.astype(jnp.bfloat16).astype(jnp.float32)
    w2_bf = w2.astype(jnp.bfloat16).astype(jnp.float32)
    h1 = jnp.maximum(x_bf @ w1_bf + b1, 0.0)
    h2 = jnp.maximum(h1.astype(jnp.bfloat16).astype(jnp.float32) @ w2_bf + b2, 0.0)
    ref = h2 @ w3 + b3

    assert out.shape == (B, 1)
    assert jnp.allclose(out, ref, atol=2e-3, rtol=2e-3), (
        f"max abs err {jnp.max(jnp.abs(out - ref))}")

    print("KERNEL_OK")
</pallas_src>

<mosaic_0001>
module attributes {stable_mosaic.version = 11 : i64} {
  func.func @mlp_kernel(%arg0: i32, %arg1: memref<32x470xf32, #tpu.memory_space<vmem>>, %arg2: memref<470x512xbf16, #tpu.memory_space<vmem>>, %arg3: memref<1x512xf32, #tpu.memory_space<vmem>>, %arg4: memref<512x64xbf16, #tpu.memory_space<vmem>>, %arg5: memref<1x64xf32, #tpu.memory_space<vmem>>, %arg6: memref<1x64xf32, #tpu.memory_space<vmem>>, %arg7: memref<1x1xf32, #tpu.memory_space<smem>>, %arg8: memref<32x1xf32, #tpu.memory_space<vmem>>) attributes {dimension_semantics = [#tpu.dimension_semantics<parallel>], iteration_bounds = array<i64: 2>, scalar_prefetch = 0 : i64, scratch_operands = 0 : i64, tpu.core_type = #tpu.core_type<tc>, window_params = [{transform_indices = @transform_0, window_bounds = array<i64: 32, 470>}, {pipeline_mode = #tpu.pipeline_mode<synchronous>, transform_indices = @transform_1, window_bounds = array<i64: 470, 512>}, {pipeline_mode = #tpu.pipeline_mode<synchronous>, transform_indices = @transform_2, window_bounds = array<i64: 1, 512>}, {pipeline_mode = #tpu.pipeline_mode<synchronous>, transform_indices = @transform_3, window_bounds = array<i64: 512, 64>}, {pipeline_mode = #tpu.pipeline_mode<synchronous>, transform_indices = @transform_4, window_bounds = array<i64: 1, 64>}, {pipeline_mode = #tpu.pipeline_mode<synchronous>, transform_indices = @transform_5, window_bounds = array<i64: 1, 64>}, {transform_indices = @transform_6, window_bounds = array<i64: 1, 1>}, {transform_indices = @transform_7, window_bounds = array<i64: 32, 1>}]} {
    %c0 = arith.constant 0 : index
    %c0_0 = arith.constant 0 : index
    %0 = vector.load %arg1[%c0, %c0_0] : memref<32x470xf32, #tpu.memory_space<vmem>>, vector<32x470xf32>
    %1 = arith.truncf %0 : vector<32x470xf32> to vector<32x470xbf16>
    %c0_1 = arith.constant 0 : index
    %c0_2 = arith.constant 0 : index
    %2 = vector.load %arg2[%c0_1, %c0_2] : memref<470x512xbf16, #tpu.memory_space<vmem>>, vector<470x512xbf16>
    %cst = arith.constant dense<0.000000e+00> : vector<32x512xf32>
    %3 = tpu.matmul %1, %2, %cst {dimension_numbers = #tpu.dot_dimension_numbers<[1], [0], [0], [1], [0, 0, 1, 1], [], []>} : vector<32x470xbf16>, vector<470x512xbf16>, vector<32x512xf32> -> vector<32x512xf32>
    %c0_3 = arith.constant 0 : index
    %c0_4 = arith.constant 0 : index
    %4 = vector.load %arg3[%c0_3, %c0_4] : memref<1x512xf32, #tpu.memory_space<vmem>>, vector<1x512xf32>
    %5 = vector.broadcast %4 : vector<1x512xf32> to vector<32x512xf32>
    %6 = arith.addf %3, %5 : vector<32x512xf32>
    %cst_5 = arith.constant 0.000000e+00 : f32
    %7 = vector.broadcast %cst_5 : f32 to vector<32x512xf32>
    %8 = arith.maximumf %6, %7 : vector<32x512xf32>
    %9 = arith.truncf %8 : vector<32x512xf32> to vector<32x512xbf16>
    %c0_6 = arith.constant 0 : index
    %c0_7 = arith.constant 0 : index
    %10 = vector.load %arg4[%c0_6, %c0_7] : memref<512x64xbf16, #tpu.memory_space<vmem>>, vector<512x64xbf16>
    %cst_8 = arith.constant dense<0.000000e+00> : vector<32x64xf32>
    %11 = tpu.matmul %9, %10, %cst_8 {dimension_numbers = #tpu.dot_dimension_numbers<[1], [0], [0], [1], [0, 0, 1, 1], [], []>} : vector<32x512xbf16>, vector<512x64xbf16>, vector<32x64xf32> -> vector<32x64xf32>
    %c0_9 = arith.constant 0 : index
    %c0_10 = arith.constant 0 : index
    %12 = vector.load %arg5[%c0_9, %c0_10] : memref<1x64xf32, #tpu.memory_space<vmem>>, vector<1x64xf32>
    %13 = vector.broadcast %12 : vector<1x64xf32> to vector<32x64xf32>
    %14 = arith.addf %11, %13 : vector<32x64xf32>
    %cst_11 = arith.constant 0.000000e+00 : f32
    %15 = vector.broadcast %cst_11 : f32 to vector<32x64xf32>
    %16 = arith.maximumf %14, %15 : vector<32x64xf32>
    %c0_12 = arith.constant 0 : index
    %c0_13 = arith.constant 0 : index
    %17 = vector.load %arg6[%c0_12, %c0_13] : memref<1x64xf32, #tpu.memory_space<vmem>>, vector<1x64xf32>
    %18 = vector.broadcast %17 : vector<1x64xf32> to vector<32x64xf32>
    %19 = arith.mulf %16, %18 : vector<32x64xf32>
    %cst_14 = arith.constant dense<0.000000e+00> : vector<32xf32>
    %20 = vector.multi_reduction <add>, %19, %cst_14 [1] : vector<32x64xf32> to vector<32xf32>
    %21 = vector.shape_cast %20 : vector<32xf32> to vector<32x1xf32>
    %c0_15 = arith.constant 0 : index
    %c0_16 = arith.constant 0 : index
    %22 = memref.load %arg7[%c0_15, %c0_16] : memref<1x1xf32, #tpu.memory_space<smem>>
    %23 = vector.broadcast %22 : f32 to vector<32x1xf32>
    %24 = arith.addf %21, %23 : vector<32x1xf32>
    %c0_17 = arith.constant 0 : index
    %c0_18 = arith.constant 0 : index
    %25 = vector.load %arg8[%c0_17, %c0_18] : memref<32x1xf32, #tpu.memory_space<vmem>>, vector<32x1xf32>
    tpu.vector_store %arg8[%c0_17, %c0_18], %24 {strides = array<i32>} : memref<32x1xf32, #tpu.memory_space<vmem>>, vector<32x1xf32>,
    return
  }
  func.func @transform_0(%arg0: i32) -> (i32, i32) {
    %c0_i32 = arith.constant 0 : i32
    %c0_i32_0 = arith.constant 0 : i32
    return %arg0, %c0_i32 : i32, i32
  }
  func.func @transform_1(%arg0: i32) -> (i32, i32) {
    %c0_i32 = arith.constant 0 : i32
    %c0_i32_0 = arith.constant 0 : i32
    %c0_i32_1 = arith.constant 0 : i32
    return %c0_i32, %c0_i32_0 : i32, i32
  }
  func.func @transform_2(%arg0: i32) -> (i32, i32) {
    %c0_i32 = arith.constant 0 : i32
    %c0_i32_0 = arith.constant 0 : i32
    %c0_i32_1 = arith.constant 0 : i32
    return %c0_i32, %c0_i32_0 : i32, i32
  }
  func.func @transform_3(%arg0: i32) -> (i32, i32) {
    %c0_i32 = arith.constant 0 : i32
    %c0_i32_0 = arith.constant 0 : i32
    %c0_i32_1 = arith.constant 0 : i32
    return %c0_i32, %c0_i32_0 : i32, i32
  }
  func.func @transform_4(%arg0: i32) -> (i32, i32) {
    %c0_i32 = arith.constant 0 : i32
    %c0_i32_0 = arith.constant 0 : i32
    %c0_i32_1 = arith.constant 0 : i32
    return %c0_i32, %c0_i32_0 : i32, i32
  }
  func.func @transform_5(%arg0: i32) -> (i32, i32) {
    %c0_i32 = arith.constant 0 : i32
    %c0_i32_0 = arith.constant 0 : i32
    %c0_i32_1 = arith.constant 0 : i32
    return %c0_i32, %c0_i32_0 : i32, i32
  }
  func.func @transform_6(%arg0: i32) -> (i32, i32) {
    %c0_i32 = arith.constant 0 : i32
    %c0_i32_0 = arith.constant 0 : i32
    %c0_i32_1 = arith.constant 0 : i32
    return %c0_i32, %c0_i32_0 : i32, i32
  }
  func.func @transform_7(%arg0: i32) -> (i32, i32) {
    %c0_i32 = arith.constant 0 : i32
    %c0_i32_0 = arith.constant 0 : i32
    return %arg0, %c0_i32 : i32, i32
  }
}

</mosaic_0001>

<llo_original>
// kernel: simple_linear_forward.1
$region0: #{simple_linear_forward.1}
  #allocation0 [shape = 'u32[]', space=smem, size = 0x4, offset = 0x4, fixed_abs, tag = 'smem constant byte address 0x4 - core index']
  #allocation1 [shape = 'u32[72,128]{1,0:T(1,128)}', space=vmem, size = 0x9000, scoped, tag = 'internal scratch']
  #allocation2 [shape = 'f32[1,1]{1,0:T(1,128)S(6)}', space=smem, size = 0x200, scoped, tag = 'scoped memory for simple_linear_forward.1']
  %s0 = inlined_call_operand.vmem [shape: f32[64,470], index: 0, kind: input, shape index: {}]
  %s1 = inlined_call_operand.hbm [shape: bf16[470,512], index: 1, kind: input, shape index: {}]
  %s2 = inlined_call_operand.vmem [shape: f32[1,512], index: 2, kind: input, shape index: {}]
  %s3 = inlined_call_operand.vmem [shape: bf16[512,64], index: 3, kind: input, shape index: {}]
  %s4 = inlined_call_operand.vmem [shape: f32[1,64], index: 4, kind: input, shape index: {}]
  %s5 = inlined_call_operand.vmem [shape: f32[1,64], index: 5, kind: input, shape index: {}]
  %s6 = inlined_call_operand.<no memory space> [shape: f32[1,1], index: 6, kind: input, shape index: {}]
  %s7 = inlined_call_operand.vmem [shape: f32[64,1], index: 7, kind: output, shape index: {}]
  %s8 = sld [smem:[#allocation0]]
  $region65: #{simple_linear_forward.1} parent=0
    _
  %s10 = ssub.s32 1, %s8
  %s11 = scalar_select 0, %s10, %s8
  %12 = sst [smem:[#allocation2]] %s6
  $region1: #{simple_linear_forward.1} parent=0
    #allocation3 [shape = 'u8[483328]{0}', space=vmem, size = 0x76000, scoped, tag = 'input window, operand 1, single buffered']
    #allocation4 [shape = 's32[2]{0}', space=sflag, size = 0x8, scoped, tag = 'scoped memory for simple_linear_forward.1']
    %13 = vsyncpa [#allocation4], 0
    loop: start=0, step=1, limit=4
    $region2: #{simple_linear_forward.1} parent=1 // loop_pre_header
      _
    $region3: #{simple_linear_forward.1} parent=1 // loop_header
      %s15 = sphi 0, %s19
      %p16 = scmp.ge.s32.totalorder %s15, 4
      %s25 = sphi 0, %s27
      %s28 = sphi 0, %s25
      %s29 = sphi 0, %s28
      %s45 = sphi 0, %s29
      %s49 = sphi 0, %s49
      %s51 = sphi 0, %s49
      %s52 = sphi 0, %s51
      %s66 = sphi 0, %s52
      %s70 = sphi 0, %s70
      %s72 = sphi 0, %s70
      %s73 = sphi 0, %s72
      %s87 = sphi 0, %s73
      %s91 = sphi 0, %s91
      %s93 = sphi 0, %s91
      %s94 = sphi 0, %s93
      %s108 = sphi 0, %s94
      %s112 = sphi 0, %s112
      %s114 = sphi 0, %s112
      %s115 = sphi 0, %s114
      %s129 = sphi 0, %s115
      %s133 = sphi 0, %s133
      %s135 = sphi 0, %s133
      %s136 = sphi 0, %s135
      %s150 = sphi 0, %s136
      %s154 = sphi 0, %s154
      %s156 = sphi 0, %s154
      %s157 = sphi 0, %s156
      %s171 = sphi 0, %s157
      %s177 = sphi 0, %s179
      %s180 = sphi 0, %s177
      %s181 = sphi 0, %s180
      %s197 = sphi 0, %s181
    $region4: #{simple_linear_forward.1} parent=1 // loop_header_branch
      %18 = sbr.rel (%p16) target = $region8
    $region5: #{simple_linear_forward.1} parent=1 // loop_body
      %s20 = ssub.s32 %s15, 1
      %s21 = ssub.s32 %s15, 2
      %s22 = sadd.s32 %s15, 1
      %s23 = ssub.s32 %s15, %s22
      %p24 = scmp.eq.s32.totalorder %s23, 0
      %s26 = sadd.s32 %s25, 1
      %s27 = scalar_select %p24, %s25, %s26
      %p30 = pneg %p24
      %p31 = scmp.eq.s32.totalorder %s15, 1
      %p32 = por %p30, %p31
      %p33 = scmp.ne.s32.totalorder %s25, %s28
      %p34 = scmp.eq.s32.totalorder %s15, 0
      %p35 = por %p33, %p34
      %p36 = scmp.ne.s32.totalorder %s25, %s28
      %p37 = scmp.eq.s32.totalorder %s20, 1
      %p38 = por %p36, %p37
      %p39 = scmp.ne.s32.totalorder %s28, %s29
      %p40 = scmp.eq.s32.totalorder %s20, 0
      %p41 = por %p39, %p40
      %p42 = scmp.ne.s32.totalorder %s28, %s29
      %p43 = scmp.eq.s32.totalorder %s21, 1
      %p44 = por %p42, %p43
      %p46 = scmp.ne.s32.totalorder %s29, %s45
      %p47 = scmp.eq.s32.totalorder %s21, 0
      %p48 = por %p46, %p47
      %s50 = sadd.s32 %s49, 1
      %p53 = scmp.eq.s32.totalorder %s15, 1
      %p54 = scmp.ne.s32.totalorder %s49, %s51
      %p55 = scmp.eq.s32.totalorder %s15, 0
      %p56 = por %p54, %p55
      %p57 = scmp.ne.s32.totalorder %s49, %s51
      %p58 = scmp.eq.s32.totalorder %s20, 1
      %p59 = por %p57, %p58
      %p60 = scmp.ne.s32.totalorder %s51, %s52
      %p61 = scmp.eq.s32.totalorder %s20, 0
      %p62 = por %p60, %p61
      %p63 = scmp.ne.s32.totalorder %s51, %s52
      %p64 = scmp.eq.s32.totalorder %s21, 1
      %p65 = por %p63, %p64
      %p67 = scmp.ne.s32.totalorder %s52, %s66
      %p68 = scmp.eq.s32.totalorder %s21, 0
      %p69 = por %p67, %p68
      %s71 = sadd.s32 %s70, 1
      %p74 = scmp.eq.s32.totalorder %s15, 1
      %p75 = scmp.ne.s32.totalorder %s70, %s72
      %p76 = scmp.eq.s32.totalorder %s15, 0
      %p77 = por %p75, %p76
      %p78 = scmp.ne.s32.totalorder %s70, %s72
      %p79 = scmp.eq.s32.totalorder %s20, 1
      %p80 = por %p78, %p79
      %p81 = scmp.ne.s32.totalorder %s72, %s73
      %p82 = scmp.eq.s32.totalorder %s20, 0
      %p83 = por %p81, %p82
      %p84 = scmp.ne.s32.totalorder %s72, %s73
      %p85 = scmp.eq.s32.totalorder %s21, 1
      %p86 = por %p84, %p85
      %p88 = scmp.ne.s32.totalorder %s73, %s87
      %p89 = scmp.eq.s32.totalorder %s21, 0
      %p90 = por %p88, %p89
      %s92 = sadd.s32 %s91, 1
      %p95 = scmp.eq.s32.totalorder %s15, 1
      %p96 = scmp.ne.s32.totalorder %s91, %s93
      %p97 = scmp.eq.s32.totalorder %s15, 0
      %p98 = por %p96, %p97
      %p99 = scmp.ne.s32.totalorder %s91, %s93
      %p100 = scmp.eq.s32.totalorder %s20, 1
      %p101 = por %p99, %p100
      %p102 = scmp.ne.s32.totalorder %s93, %s94
      %p103 = scmp.eq.s32.totalorder %s20, 0
      %p104 = por %p102, %p103
      %p105 = scmp.ne.s32.totalorder %s93, %s94
      %p106 = scmp.eq.s32.totalorder %s21, 1
      %p107 = por %p105, %p106
      %p109 = scmp.ne.s32.totalorder %s94, %s108
      %p110 = scmp.eq.s32.totalorder %s21, 0
      %p111 = por %p109, %p110
      %s113 = sadd.s32 %s112, 1
      %p116 = scmp.eq.s32.totalorder %s15, 1
      %p117 = scmp.ne.s32.totalorder %s112, %s114
      %p118 = scmp.eq.s32.totalorder %s15, 0
      %p119 = por %p117, %p118
      %p120 = scmp.ne.s32.totalorder %s112, %s114
      %p121 = scmp.eq.s32.totalorder %s20, 1
      %p122 = por %p120, %p121
      %p123 = scmp.ne.s32.totalorder %s114, %s115
      %p124 = scmp.eq.s32.totalorder %s20, 0
      %p125 = por %p123, %p124
      %p126 = scmp.ne.s32.totalorder %s114, %s115
      %p127 = scmp.eq.s32.totalorder %s21, 1
      %p128 = por %p126, %p127
      %p130 = scmp.ne.s32.totalorder %s115, %s129
      %p131 = scmp.eq.s32.totalorder %s21, 0
      %p132 = por %p130, %p131
      %s134 = sadd.s32 %s133, 1
      %p137 = scmp.eq.s32.totalorder %s15, 1
      %p138 = scmp.ne.s32.totalorder %s133, %s135
      %p139 = scmp.eq.s32.totalorder %s15, 0
      %p140 = por %p138, %p139
      %p141 = scmp.ne.s32.totalorder %s133, %s135
      %p142 = scmp.eq.s32.totalorder %s20, 1
      %p143 = por %p141, %p142
      %p144 = scmp.ne.s32.totalorder %s135, %s136
      %p145 = scmp.eq.s32.totalorder %s20, 0
      %p146 = por %p144, %p145
      %p147 = scmp.ne.s32.totalorder %s135, %s136
      %p148 = scmp.eq.s32.totalorder %s21, 1
      %p149 = por %p147, %p148
      %p151 = scmp.ne.s32.totalorder %s136, %s150
      %p152 = scmp.eq.s32.totalorder %s21, 0
      %p153 = por %p151, %p152
      %s155 = sadd.s32 %s154, 1
      %p158 = scmp.eq.s32.totalorder %s15, 1
      %p159 = scmp.ne.s32.totalorder %s154, %s156
      %p160 = scmp.eq.s32.totalorder %s15, 0
      %p161 = por %p159, %p160
      %p162 = scmp.ne.s32.totalorder %s154, %s156
      %p163 = scmp.eq.s32.totalorder %s20, 1
      %p164 = por %p162, %p163
      %p165 = scmp.ne.s32.totalorder %s156, %s157
      %p166 = scmp.eq.s32.totalorder %s20, 0
      %p167 = por %p165, %p166
      %p168 = scmp.ne.s32.totalorder %s156, %s157
      %p169 = scmp.eq.s32.totalorder %s21, 1
      %p170 = por %p168, %p169
      %p172 = scmp.ne.s32.totalorder %s157, %s171
      %p173 = scmp.eq.s32.totalorder %s21, 0
      %p174 = por %p172, %p173
      %s175 = ssub.s32 %s15, %s22
      %p176 = scmp.eq.s32.totalorder %s175, 0
      %s178 = sadd.s32 %s177, 1
      %s179 = scalar_select %p176, %s177, %s178
      %p182 = pneg %p176
      %p183 = scmp.eq.s32.totalorder %s15, 1
      %p184 = por %p182, %p183
      %p185 = scmp.ne.s32.totalorder %s177, %s180
      %p186 = scmp.eq.s32.totalorder %s15, 0
      %p187 = por %p185, %p186
      %p188 = scmp.ne.s32.totalorder %s177, %s180
      %p189 = scmp.eq.s32.totalorder %s20, 1
      %p190 = por %p188, %p189
      %p191 = scmp.ne.s32.totalorder %s180, %s181
      %p192 = scmp.eq.s32.totalorder %s20, 0
      %p193 = por %p191, %p192
      %p194 = scmp.ne.s32.totalorder %s180, %s181
      %p195 = scmp.eq.s32.totalorder %s21, 1
      %p196 = por %p194, %p195
      %p198 = scmp.ne.s32.totalorder %s181, %s197
      %p199 = scmp.eq.s32.totalorder %s21, 0
      %p200 = por %p198, %p199
      %p201 = scmp.le.s32.totalorder 1, %s15
      %p202 = scmp.lt.s32.totalorder %s15, 3
      %p203 = pnand %p201, %p202
      %p204 = pneg %p203
      // Predicated region
      $region9: #{simple_linear_forward.1} parent=5 // pred_check
        _
      $region10: #{simple_linear_forward.1} parent=5 // pred_check_branch
        %206 = sbr.rel (%p203) target = $region12
      $region11: #{simple_linear_forward.1} parent=5 // pred_region
        %s207 = ssub.s32 %s15, 1
        // Predicated region
        $region13: #{simple_linear_forward.1} parent=11 // pred_check
          %p208 = pneg %p62
        $region14: #{simple_linear_forward.1} parent=11 // pred_check_branch
          %210 = sbr.rel (%p208) target = $region16
        $region15: #{simple_linear_forward.1} parent=11 // pred_region
          %212 = vsyncadd [#allocation4], 0
          %s213 = sshll.u32 %s1, 4
          %s214 = int_to_ptr.hbm [resolvable:$true] %s213
          %s215 = sshll.u32 [#allocation3], 4
          %s216 = int_to_ptr.vmem [resolvable:$true] %s215
          %221 = dma.hbm_to_vmem [thread:$0]  %s214, 15104, %s216, [#allocation4], 256, 256, 16
        $region16: #{simple_linear_forward.1} parent=11 // pred_fallthru
          _
        // Predicated region
        $region17: #{simple_linear_forward.1} parent=11 // pred_check
          %p222 = pneg %p83
        $region18: #{simple_linear_forward.1} parent=11 // pred_check_branch
          %224 = sbr.rel (%p222) target = $region20
        $region19: #{simple_linear_forward.1} parent=11 // pred_region
          _
        $region20: #{simple_linear_forward.1} parent=11 // pred_fallthru
          _
        // Predicated region
        $region21: #{simple_linear_forward.1} parent=11 // pred_check
          %p225 = pneg %p104
        $region22: #{simple_linear_forward.1} parent=11 // pred_check_branch
          %227 = sbr.rel (%p225) target = $region24
        $region23: #{simple_linear_forward.1} parent=11 // pred_region
          _
        $region24: #{simple_linear_forward.1} parent=11 // pred_fallthru
          _
        // Predicated region
        $region25: #{simple_linear_forward.1} parent=11 // pred_check
          %p228 = pneg %p125
        $region26: #{simple_linear_forward.1} parent=11 // pred_check_branch
          %230 = sbr.rel (%p228) target = $region28
        $region27: #{simple_linear_forward.1} parent=11 // pred_region
          _
        $region28: #{simple_linear_forward.1} parent=11 // pred_fallthru
          _
        // Predicated region
        $region29: #{simple_linear_forward.1} parent=11 // pred_check
          %p231 = pneg %p146
        $region30: #{simple_linear_forward.1} parent=11 // pred_check_branch
          %233 = sbr.rel (%p231) target = $region32
        $region31: #{simple_linear_forward.1} parent=11 // pred_region
          _
        $region32: #{simple_linear_forward.1} parent=11 // pred_fallthru
          _
        // Predicated region
        $region33: #{simple_linear_forward.1} parent=11 // pred_check
          %p234 = pneg %p167
        $region34: #{simple_linear_forward.1} parent=11 // pred_check_branch
          %236 = sbr.rel (%p234) target = $region36
        $region35: #{simple_linear_forward.1} parent=11 // pred_region
          _
        $region36: #{simple_linear_forward.1} parent=11 // pred_fallthru
          _
      $region12: #{simple_linear_forward.1} parent=5 // pred_fallthru
        _
      %p237 = scmp.lt.s32.totalorder %s15, 2
      // Predicated region
      $region37: #{simple_linear_forward.1} parent=5 // pred_check
        %p238 = pneg %p237
      $region38: #{simple_linear_forward.1} parent=5 // pred_check_branch
        %240 = sbr.rel (%p238) target = $region40
      $region39: #{simple_linear_forward.1} parent=5 // pred_region
        // Predicated region
        $region41: #{simple_linear_forward.1} parent=39 // pred_check
          %p241 = pneg %p35
        $region42: #{simple_linear_forward.1} parent=39 // pred_check_branch
          %243 = sbr.rel (%p241) target = $region44
        $region43: #{simple_linear_forward.1} parent=39 // pred_region
          %s244 = smul.u32 4, %s15
          %p245 = scmp.lt.s32.totalorder %s244, 7
          %s246 = scalar_select %p245, %s244, 7
          %s247 = smul.addr %s246, 4
          %s248 = smul.addr %s247, 8
          %s249 = scalar_lea.vmem %s0, %s248
          %s250 = smul.u32 4, %s15
        $region44: #{simple_linear_forward.1} parent=39 // pred_fallthru
          _
      $region40: #{simple_linear_forward.1} parent=5 // pred_fallthru
        _
      %p251 = scmp.le.s32.totalorder 1, %s15
      %p252 = scmp.lt.s32.totalorder %s15, 3
      %p253 = pnand %p251, %p252
      %p254 = pneg %p253
      // Predicated region
      $region45: #{simple_linear_forward.1} parent=5 // pred_check
        _
      $region46: #{simple_linear_forward.1} parent=5 // pred_check_branch
        %256 = sbr.rel (%p253) target = $region48
      $region47: #{simple_linear_forward.1} parent=5 // pred_region
        %s257 = ssub.s32 %s15, 1
        // Predicated region
        $region49: #{simple_linear_forward.1} parent=47 // pred_check
          %p258 = pneg %p62
        $region50: #{simple_linear_forward.1} parent=47 // pred_check_branch
          %260 = sbr.rel (%p258) target = $region52
        $region51: #{simple_linear_forward.1} parent=47 // pred_region
          %262 = dma.done [#allocation4], 15104
        $region52: #{simple_linear_forward.1} parent=47 // pred_fallthru
          _
        %s263 = smul.u32 4, %s20
        %p264 = scmp.lt.s32.totalorder %s263, 7
        %s265 = scalar_select %p264, %s263, 7
        %s266 = smul.addr %s265, 4
        %s267 = smul.addr %s266, 8
        %s268 = scalar_lea.vmem %s0, %s267
        %p269 = pneg %p41
        %p270 = pneg %p38
        %p271 = pneg %p62
        %p272 = pneg %p59
        %p273 = pneg %p83
        %p274 = pneg %p80
        %p275 = pneg %p104
        %p276 = pneg %p101
        %p277 = pneg %p125
        %p278 = pneg %p122
        %p279 = pneg %p146
        %p280 = pneg %p143
        %p281 = pneg %p167
        %p282 = pneg %p164
        %p283 = pneg %p193
        %p284 = pneg %p190
        %s285 = smul.u32 4, %s20
        %p286 = scmp.lt.s32.totalorder %s285, 7
        %s287 = scalar_select %p286, %s285, 7
        %s288 = smul.addr %s287, 8
        %s289 = scalar_lea.vmem %s7, %s288
        %s290 = smul.u32 4, %s20
        %p291 = scmp.lt.s32.totalorder %s290, 7
        %s292 = scalar_select %p291, %s290, 7
        %s293 = smul.addr %s292, 4
        %s294 = smul.addr %s293, 8
        %s295 = scalar_lea.vmem %s0, %s294
        %s296 = smul.u32 4, %s20
        %s297 = smul.u32 4, %s20
        %p298 = scmp.lt.s32.totalorder %s297, 7
        %s299 = scalar_select %p298, %s297, 7
        %s300 = smul.addr %s299, 8
        %s301 = scalar_lea.vmem %s7, %s300
        %s302 = smul.u32 4, %s20
        %v304 = vld [vmem:[%s295] sm:$0xff]
        %v305 = vld [vmem:[%s295 + $0x8] sm:$0xff]
        %v306 = vld [vmem:[%s295 + $0x10] sm:$0xff]
        %v307 = vld [vmem:[%s295 + $0x18] sm:$0xff]
        %v308 = vld [vmem:[%s295 + $0x20] sm:$0xff]
        %v309 = vld [vmem:[%s295 + $0x28] sm:$0xff]
        %v310 = vld [vmem:[%s295 + $0x30] sm:$0xff]
        %v311 = vld [vmem:[%s295 + $0x38] sm:$0xff]
        %v312 = vld [vmem:[%s295 + $0x40] sm:$0xff]
        %v313 = vld [vmem:[%s295 + $0x48] sm:$0xff]
        %v314 = vld [vmem:[%s295 + $0x50] sm:$0xff]
        %v315 = vld [vmem:[%s295 + $0x58] sm:$0xff]
        %v316 = vld [vmem:[%s295 + $0x60] sm:$0xff]
        %v317 = vld [vmem:[%s295 + $0x68] sm:$0xff]
        %v318 = vld [vmem:[%s295 + $0x70] sm:$0xff]
        %v319 = vld [vmem:[%s295 + $0x78] sm:$0xff]
        %v320 = vpack.c.bf16 %v308, %v304
        %v321 = vpack.c.bf16 %v309, %v305
        %v322 = vpack.c.bf16 %v310, %v306
        %v323 = vpack.c.bf16 %v311, %v307
        %v324 = vpack.c.bf16 %v316, %v312
        %v325 = vpack.c.bf16 %v317, %v313
        %v326 = vpack.c.bf16 %v318, %v314
        %v327 = vpack.c.bf16 %v319, %v315
        %v328 = vld [vmem:[#allocation3] sm:$0xff]
        %v329 = vld [vmem:[#allocation3 + $0x8] sm:$0xff]
        %v330 = vld [vmem:[#allocation3 + $0x10] sm:$0xff]
        %v331 = vld [vmem:[#allocation3 + $0x18] sm:$0xff]
        %v332 = vld [vmem:[#allocation3 + $0x20] sm:$0xff]
        %v333 = vld [vmem:[#allocation3 + $0x28] sm:$0xff]
        %v334 = vld [vmem:[#allocation3 + $0x30] sm:$0xff]
        %v335 = vld [vmem:[#allocation3 + $0x38] sm:$0xff]
        %v336 = vld [vmem:[#allocation3 + $0x40] sm:$0xff]
        %v337 = vld [vmem:[#allocation3 + $0x48] sm:$0xff]
        %v338 = vld [vmem:[#allocation3 + $0x50] sm:$0xff]
        %v339 = vld [vmem:[#allocation3 + $0x58] sm:$0xff]
        %v340 = vld [vmem:[#allocation3 + $0x60] sm:$0xff]
        %v341 = vld [vmem:[#allocation3 + $0x68] sm:$0xff]
        %v342 = vld [vmem:[#allocation3 + $0x70] sm:$0xff]
        %v343 = vld [vmem:[#allocation3 + $0x78] sm:$0xff]
        %v344 = vld [vmem:[#allocation3 + $0x80] sm:$0xff]
        %v345 = vld [vmem:[#allocation3 + $0x88] sm:$0xff]
        %v346 = vld [vmem:[#allocation3 + $0x90] sm:$0xff]
        %v347 = vld [vmem:[#allocation3 + $0x98] sm:$0xff]
        %v348 = vld [vmem:[#allocation3 + $0xa0] sm:$0xff]
        %v349 = vld [vmem:[#allocation3 + $0xa8] sm:$0xff]
        %v350 = vld [vmem:[#allocation3 + $0xb0] sm:$0xff]
        %v351 = vld [vmem:[#allocation3 + $0xb8] sm:$0xff]
        %v352 = vld [vmem:[#allocation3 + $0xc0] sm:$0xff]
        %v353 = vld [vmem:[#allocation3 + $0xc8] sm:$0xff]
        %v354 = vld [vmem:[#allocation3 + $0xd0] sm:$0xff]
        %v355 = vld [vmem:[#allocation3 + $0xd8] sm:$0xff]
        %v356 = vld [vmem:[#allocation3 + $0xe0] sm:$0xff]
        %v357 = vld [vmem:[#allocation3 + $0xe8] sm:$0xff]
        %v358 = vld [vmem:[#allocation3 + $0xf0] sm:$0xff]
        %v359 = vld [vmem:[#allocation3 + $0xf8] sm:$0xff]
        %v360 = vld [vmem:[#allocation3 + $0x100] sm:$0xff]
        %v361 = vld [vmem:[#allocation3 + $0x108] sm:$0xff]
        %v362 = vld [vmem:[#allocation3 + $0x110] sm:$0xff]
        %v363 = vld [vmem:[#allocation3 + $0x118] sm:$0xff]
        %v364 = vld [vmem:[#allocation3 + $0x120] sm:$0xff]
        %v365 = vld [vmem:[#allocation3 + $0x128] sm:$0xff]
        %v366 = vld [vmem:[#allocation3 + $0x130] sm:$0xff]
        %v367 = vld [vmem:[#allocation3 + $0x138] sm:$0xff]
        %v368 = vld [vmem:[#allocation3 + $0x140] sm:$0xff]
        %v369 = vld [vmem:[#allocation3 + $0x148] sm:$0xff]
        %v370 = vld [vmem:[#allocation3 + $0x150] sm:$0xff]
        %v371 = vld [vmem:[#allocation3 + $0x158] sm:$0xff]
        %v372 = vld [vmem:[#allocation3 + $0x160] sm:$0xff]
        %v373 = vld [vmem:[#allocation3 + $0x168] sm:$0xff]
        %v374 = vld [vmem:[#allocation3 + $0x170] sm:$0xff]
        %v375 = vld [vmem:[#allocation3 + $0x178] sm:$0xff]
        %v376 = vld [vmem:[#allocation3 + $0x180] sm:$0xff]
        %v377 = vld [vmem:[#allocation3 + $0x188] sm:$0xff]
        %v378 = vld [vmem:[#allocation3 + $0x190] sm:$0xff]
        %v379 = vld [vmem:[#allocation3 + $0x198] sm:$0xff]
        %v380 = vld [vmem:[#allocation3 + $0x1a0] sm:$0xff]
        %v381 = vld [vmem:[#allocation3 + $0x1a8] sm:$0xff]
        %v382 = vld [vmem:[#allocation3 + $0x1b0] sm:$0xff]
        %v383 = vld [vmem:[#allocation3 + $0x1b8] sm:$0xff]
        %v384 = vld [vmem:[#allocation3 + $0x1c0] sm:$0xff]
        %v385 = vld [vmem:[#allocation3 + $0x1c8] sm:$0xff]
        %v386 = vld [vmem:[#allocation3 + $0x1d0] sm:$0xff]
        %v387 = vld [vmem:[#allocation3 + $0x1d8] sm:$0xff]
        %v388 = vld [vmem:[#allocation3 + $0x1e0] sm:$0xff]
        %v389 = vld [vmem:[#allocation3 + $0x1e8] sm:$0xff]
        %v390 = vld [vmem:[#allocation3 + $0x1f0] sm:$0xff]
        %v391 = vld [vmem:[#allocation3 + $0x1f8] sm:$0xff]
        %v392 = vld [vmem:[#allocation3 + $0x200] sm:$0xff]
        %v393 = vld [vmem:[#allocation3 + $0x208] sm:$0xff]
        %v394 = vld [vmem:[#allocation3 + $0x210] sm:$0xff]
        %v395 = vld [vmem:[#allocation3 + $0x218] sm:$0xff]
        %v396 = vld [vmem:[#allocation3 + $0x220] sm:$0xff]
        %v397 = vld [vmem:[#allocation3 + $0x228] sm:$0xff]
        %v398 = vld [vmem:[#allocation3 + $0x230] sm:$0xff]
        %v399 = vld [vmem:[#allocation3 + $0x238] sm:$0xff]
        %v400 = vld [vmem:[#allocation3 + $0x240] sm:$0xff]
        %v401 = vld [vmem:[#allocation3 + $0x248] sm:$0xff]
        %v402 = vld [vmem:[#allocation3 + $0x250] sm:$0xff]
        %v403 = vld [vmem:[#allocation3 + $0x258] sm:$0xff]
        %v404 = vld [vmem:[#allocation3 + $0x260] sm:$0xff]
        %v405 = vld [vmem:[#allocation3 + $0x268] sm:$0xff]
        %v406 = vld [vmem:[#allocation3 + $0x270] sm:$0xff]
        %v407 = vld [vmem:[#allocation3 + $0x278] sm:$0xff]
        %v408 = vld [vmem:[#allocation3 + $0x280] sm:$0xff]
        %v409 = vld [vmem:[#allocation3 + $0x288] sm:$0xff]
        %v410 = vld [vmem:[#allocation3 + $0x290] sm:$0xff]
        %v411 = vld [vmem:[#allocation3 + $0x298] sm:$0xff]
        %v412 = vld [vmem:[#allocation3 + $0x2a0] sm:$0xff]
        %v413 = vld [vmem:[#allocation3 + $0x2a8] sm:$0xff]
        %v414 = vld [vmem:[#allocation3 + $0x2b0] sm:$0xff]
        %v415 = vld [vmem:[#allocation3 + $0x2b8] sm:$0xff]
        %v416 = vld [vmem:[#allocation3 + $0x2c0] sm:$0xff]
        %v417 = vld [vmem:[#allocation3 + $0x2c8] sm:$0xff]
        %v418 = vld [vmem:[#allocation3 + $0x2d0] sm:$0xff]
        %v419 = vld [vmem:[#allocation3 + $0x2d8] sm:$0xff]
        %v420 = vld [vmem:[#allocation3 + $0x2e0] sm:$0xff]
        %v421 = vld [vmem:[#allocation3 + $0x2e8] sm:$0xff]
        %v422 = vld [vmem:[#allocation3 + $0x2f0] sm:$0xff]
        %v423 = vld [vmem:[#allocation3 + $0x2f8] sm:$0xff]
        %v424 = vld [vmem:[#allocation3 + $0x300] sm:$0xff]
        %v425 = vld [vmem:[#allocation3 + $0x308] sm:$0xff]
        %v426 = vld [vmem:[#allocation3 + $0x310] sm:$0xff]
        %v427 = vld [vmem:[#allocation3 + $0x318] sm:$0xff]
        %v428 = vld [vmem:[#allocation3 + $0x320] sm:$0xff]
        %v429 = vld [vmem:[#allocation3 + $0x328] sm:$0xff]
        %v430 = vld [vmem:[#allocation3 + $0x330] sm:$0xff]
        %v431 = vld [vmem:[#allocation3 + $0x338] sm:$0xff]
        %v432 = vld [vmem:[#allocation3 + $0x340] sm:$0xff]
        %v433 = vld [vmem:[#allocation3 + $0x348] sm:$0xff]
        %v434 = vld [vmem:[#allocation3 + $0x350] sm:$0xff]
        %v435 = vld [vmem:[#allocation3 + $0x358] sm:$0xff]
        %v436 = vld [vmem:[#allocation3 + $0x360] sm:$0xff]
        %v437 = vld [vmem:[#allocation3 + $0x368] sm:$0xff]
        %v438 = vld [vmem:[#allocation3 + $0x370] sm:$0xff]
        %v439 = vld [vmem:[#allocation3 + $0x378] sm:$0xff]
        %v440 = vld [vmem:[#allocation3 + $0x380] sm:$0xff]
        %v441 = vld [vmem:[#allocation3 + $0x388] sm:$0xff]
        %v442 = vld [vmem:[#allocation3 + $0x390] sm:$0xff]
        %v443 = vld [vmem:[#allocation3 + $0x398] sm:$0xff]
        %v444 = vld [vmem:[#allocation3 + $0x3a0] sm:$0x77]
        %v445 = vld [vmem:[#allocation3 + $0x3a8] sm:$0x77]
        %v446 = vld [vmem:[%s2] sm:$0xf]
        %v448 = vperm.slane %v446, 0
        %v449 = vperm.slane %v446, 1
        %v450 = vperm.slane %v446, 2
        %v451 = vperm.slane %v446, 3
        %v574 = vunpack.c.l.b16 %v328
        %v575 = vunpack.c.h.b16 %v328
        %v576 = vunpack.c.l.b16 %v329
        %v577 = vunpack.c.h.b16 %v329
        %v578 = vunpack.c.l.b16 %v330
        %v579 = vunpack.c.h.b16 %v330
        %v580 = vunpack.c.l.b16 %v331
        %v581 = vunpack.c.h.b16 %v331
        %v582 = vunpack.c.l.b16 %v332
        %v583 = vunpack.c.h.b16 %v332
        %v584 = vunpack.c.l.b16 %v333
        %v585 = vunpack.c.h.b16 %v333
        %v586 = vunpack.c.l.b16 %v334
        %v587 = vunpack.c.h.b16 %v334
        %v588 = vunpack.c.l.b16 %v335
        %v589 = vunpack.c.h.b16 %v335
        %v590 = vunpack.c.l.b16 %v336
        %v591 = vunpack.c.h.b16 %v336
        %v592 = vunpack.c.l.b16 %v337
        %v593 = vunpack.c.h.b16 %v337
        %v594 = vunpack.c.l.b16 %v338
        %v595 = vunpack.c.h.b16 %v338
        %v596 = vunpack.c.l.b16 %v339
        %v597 = vunpack.c.h.b16 %v339
        %v598 = vunpack.c.l.b16 %v340
        %v599 = vunpack.c.h.b16 %v340
        %v600 = vunpack.c.l.b16 %v341
        %v601 = vunpack.c.h.b16 %v341
        %v602 = vunpack.c.l.b16 %v342
        %v603 = vunpack.c.h.b16 %v342
        %v604 = vunpack.c.l.b16 %v343
        %v605 = vunpack.c.h.b16 %v343
        %v606 = vunpack.c.l.b16 %v344
        %v607 = vunpack.c.h.b16 %v344
        %v608 = vunpack.c.l.b16 %v345
        %v609 = vunpack.c.h.b16 %v345
        %v610 = vunpack.c.l.b16 %v346
        %v611 = vunpack.c.h.b16 %v346
        %v612 = vunpack.c.l.b16 %v347
        %v613 = vunpack.c.h.b16 %v347
        %v614 = vunpack.c.l.b16 %v348
        %v615 = vunpack.c.h.b16 %v348
        %v616 = vunpack.c.l.b16 %v349
        %v617 = vunpack.c.h.b16 %v349
        %v618 = vunpack.c.l.b16 %v350
        %v619 = vunpack.c.h.b16 %v350
        %v620 = vunpack.c.l.b16 %v351
        %v621 = vunpack.c.h.b16 %v351
        %v622 = vunpack.c.l.b16 %v352
        %v623 = vunpack.c.h.b16 %v352
        %v624 = vunpack.c.l.b16 %v353
        %v625 = vunpack.c.h.b16 %v353
        %v626 = vunpack.c.l.b16 %v354
        %v627 = vunpack.c.h.b16 %v354
        %v628 = vunpack.c.l.b16 %v355
        %v629 = vunpack.c.h.b16 %v355
        %v630 = vunpack.c.l.b16 %v356
        %v631 = vunpack.c.h.b16 %v356
        %v632 = vunpack.c.l.b16 %v357
        %v633 = vunpack.c.h.b16 %v357
        %v634 = vunpack.c.l.b16 %v358
        %v635 = vunpack.c.h.b16 %v358
        %v636 = vunpack.c.l.b16 %v359
        %v637 = vunpack.c.h.b16 %v359
        %v638 = vunpack.c.l.b16 %v360
        %v639 = vunpack.c.h.b16 %v360
        %v640 = vunpack.c.l.b16 %v361
        %v641 = vunpack.c.h.b16 %v361
        %v642 = vunpack.c.l.b16 %v362
        %v643 = vunpack.c.h.b16 %v362
        %v644 = vunpack.c.l.b16 %v363
        %v645 = vunpack.c.h.b16 %v363
        %v646 = vunpack.c.l.b16 %v364
        %v647 = vunpack.c.h.b16 %v364
        %v648 = vunpack.c.l.b16 %v365
        %v649 = vunpack.c.h.b16 %v365
        %v650 = vunpack.c.l.b16 %v366
        %v651 = vunpack.c.h.b16 %v366
        %v652 = vunpack.c.l.b16 %v367
        %v653 = vunpack.c.h.b16 %v367
        %v654 = vunpack.c.l.b16 %v368
        %v655 = vunpack.c.h.b16 %v368
        %v656 = vunpack.c.l.b16 %v369
        %v657 = vunpack.c.h.b16 %v369
        %v658 = vunpack.c.l.b16 %v370
        %v659 = vunpack.c.h.b16 %v370
        %v660 = vunpack.c.l.b16 %v371
        %v661 = vunpack.c.h.b16 %v371
        %v662 = vunpack.c.l.b16 %v372
        %v663 = vunpack.c.h.b16 %v372
        %v664 = vunpack.c.l.b16 %v373
        %v665 = vunpack.c.h.b16 %v373
        %v666 = vunpack.c.l.b16 %v374
        %v667 = vunpack.c.h.b16 %v374
        %v668 = vunpack.c.l.b16 %v375
        %v669 = vunpack.c.h.b16 %v375
        %v670 = vunpack.c.l.b16 %v376
        %v671 = vunpack.c.h.b16 %v376
        %v672 = vunpack.c.l.b16 %v377
        %v673 = vunpack.c.h.b16 %v377
        %v674 = vunpack.c.l.b16 %v378
        %v675 = vunpack.c.h.b16 %v378
        %v676 = vunpack.c.l.b16 %v379
        %v677 = vunpack.c.h.b16 %v379
        %v678 = vunpack.c.l.b16 %v380
        %v679 = vunpack.c.h.b16 %v380
        %v680 = vunpack.c.l.b16 %v381
        %v681 = vunpack.c.h.b16 %v381
        %v682 = vunpack.c.l.b16 %v382
        %v683 = vunpack.c.h.b16 %v382
        %v684 = vunpack.c.l.b16 %v383
        %v685 = vunpack.c.h.b16 %v383
        %v686 = vunpack.c.l.b16 %v384
        %v687 = vunpack.c.h.b16 %v384
        %v688 = vunpack.c.l.b16 %v385
        %v689 = vunpack.c.h.b16 %v385
        %v690 = vunpack.c.l.b16 %v386
        %v691 = vunpack.c.h.b16 %v386
        %v692 = vunpack.c.l.b16 %v387
        %v693 = vunpack.c.h.b16 %v387
        %v694 = vunpack.c.l.b16 %v388
        %v695 = vunpack.c.h.b16 %v388
        %v696 = vunpack.c.l.b16 %v389
        %v697 = vunpack.c.h.b16 %v389
        %v698 = vunpack.c.l.b16 %v390
        %v699 = vunpack.c.h.b16 %v390
        %v700 = vunpack.c.l.b16 %v391
        %v701 = vunpack.c.h.b16 %v391
        %v702 = vunpack.c.l.b16 %v392
        %v703 = vunpack.c.h.b16 %v392
        %v704 = vunpack.c.l.b16 %v393
        %v705 = vunpack.c.h.b16 %v393
        %v706 = vunpack.c.l.b16 %v394
        %v707 = vunpack.c.h.b16 %v394
        %v708 = vunpack.c.l.b16 %v395
        %v709 = vunpack.c.h.b16 %v395
        %v710 = vunpack.c.l.b16 %v396
        %v711 = vunpack.c.h.b16 %v396
        %v712 = vunpack.c.l.b16 %v397
        %v713 = vunpack.c.h.b16 %v397
        %v714 = vunpack.c.l.b16 %v398
        %v715 = vunpack.c.h.b16 %v398
        %v716 = vunpack.c.l.b16 %v399
        %v717 = vunpack.c.h.b16 %v399
        %v718 = vunpack.c.l.b16 %v400
        %v719 = vunpack.c.h.b16 %v400
        %v720 = vunpack.c.l.b16 %v401
        %v721 = vunpack.c.h.b16 %v401
        %v722 = vunpack.c.l.b16 %v402
        %v723 = vunpack.c.h.b16 %v402
        %v724 = vunpack.c.l.b16 %v403
        %v725 = vunpack.c.h.b16 %v403
        %v726 = vunpack.c.l.b16 %v404
        %v727 = vunpack.c.h.b16 %v404
        %v728 = vunpack.c.l.b16 %v405
        %v729 = vunpack.c.h.b16 %v405
        %v730 = vunpack.c.l.b16 %v406
        %v731 = vunpack.c.h.b16 %v406
        %v732 = vunpack.c.l.b16 %v407
        %v733 = vunpack.c.h.b16 %v407
        %v734 = vunpack.c.l.b16 %v408
        %v735 = vunpack.c.h.b16 %v408
        %v736 = vunpack.c.l.b16 %v409
        %v737 = vunpack.c.h.b16 %v409
        %v738 = vunpack.c.l.b16 %v410
        %v739 = vunpack.c.h.b16 %v410
        %v740 = vunpack.c.l.b16 %v411
        %v741 = vunpack.c.h.b16 %v411
        %v742 = vunpack.c.l.b16 %v412
        %v743 = vunpack.c.h.b16 %v412
        %v744 = vunpack.c.l.b16 %v413
        %v745 = vunpack.c.h.b16 %v413
        %v746 = vunpack.c.l.b16 %v414
        %v747 = vunpack.c.h.b16 %v414
        %v748 = vunpack.c.l.b16 %v415
        %v749 = vunpack.c.h.b16 %v415
        %v750 = vunpack.c.l.b16 %v416
        %v751 = vunpack.c.h.b16 %v416
        %v752 = vunpack.c.l.b16 %v417
        %v753 = vunpack.c.h.b16 %v417
        %v754 = vunpack.c.l.b16 %v418
        %v755 = vunpack.c.h.b16 %v418
        %v756 = vunpack.c.l.b16 %v419
        %v757 = vunpack.c.h.b16 %v419
        %v758 = vunpack.c.l.b16 %v420
        %v759 = vunpack.c.h.b16 %v420
        %v760 = vunpack.c.l.b16 %v421
        %v761 = vunpack.c.h.b16 %v421
        %v762 = vunpack.c.l.b16 %v422
        %v763 = vunpack.c.h.b16 %v422
        %v764 = vunpack.c.l.b16 %v423
        %v765 = vunpack.c.h.b16 %v423
        %v766 = vunpack.c.l.b16 %v424
        %v767 = vunpack.c.h.b16 %v424
        %v768 = vunpack.c.l.b16 %v425
        %v769 = vunpack.c.h.b16 %v425
        %v770 = vunpack.c.l.b16 %v426
        %v771 = vunpack.c.h.b16 %v426
        %v772 = vunpack.c.l.b16 %v427
        %v773 = vunpack.c.h.b16 %v427
        %v774 = vunpack.c.l.b16 %v428
        %v775 = vunpack.c.h.b16 %v428
        %v776 = vunpack.c.l.b16 %v429
        %v777 = vunpack.c.h.b16 %v429
        %v778 = vunpack.c.l.b16 %v430
        %v779 = vunpack.c.h.b16 %v430
        %v780 = vunpack.c.l.b16 %v431
        %v781 = vunpack.c.h.b16 %v431
        %v782 = vunpack.c.l.b16 %v432
        %v783 = vunpack.c.h.b16 %v432
        %v784 = vunpack.c.l.b16 %v433
        %v785 = vunpack.c.h.b16 %v433
        %v786 = vunpack.c.l.b16 %v434
        %v787 = vunpack.c.h.b16 %v434
        %v788 = vunpack.c.l.b16 %v435
        %v789 = vunpack.c.h.b16 %v435
        %v790 = vunpack.c.l.b16 %v436
        %v791 = vunpack.c.h.b16 %v436
        %v792 = vunpack.c.l.b16 %v437
        %v793 = vunpack.c.h.b16 %v437
        %v794 = vunpack.c.l.b16 %v438
        %v795 = vunpack.c.h.b16 %v438
        %v796 = vunpack.c.l.b16 %v439
        %v797 = vunpack.c.h.b16 %v439
        %v798 = vunpack.c.l.b16 %v440
        %v799 = vunpack.c.h.b16 %v440
        %v800 = vunpack.c.l.b16 %v441
        %v801 = vunpack.c.h.b16 %v441
        %v802 = vunpack.c.l.b16 %v442
        %v803 = vunpack.c.h.b16 %v442
        %v804 = vunpack.c.l.b16 %v443
        %v805 = vunpack.c.h.b16 %v443
        %v806 = vunpack.c.l.b16 %v444
        %v807 = vunpack.c.h.b16 %v444
        %v808 = vunpack.c.l.b16 %v445
        %v809 = vunpack.c.h.b16 %v445
        %v810 = vpack.c.b16 %v578, %v574
        %v811 = vpack.c.b16 %v579, %v575
        %v812 = vpack.c.b16 %v580, %v576
        %v813 = vpack.c.b16 %v581, %v577
        %v814 = vpack.c.b16 %v586, %v582
        %v815 = vpack.c.b16 %v587, %v583
        %v816 = vpack.c.b16 %v588, %v584
        %v817 = vpack.c.b16 %v589, %v585
        %v818 = vpack.c.b16 %v594, %v590
        %v819 = vpack.c.b16 %v595, %v591
        %v820 = vpack.c.b16 %v596, %v592
        %v821 = vpack.c.b16 %v597, %v593
        %v822 = vpack.c.b16 %v602, %v598
        %v823 = vpack.c.b16 %v603, %v599
        %v824 = vpack.c.b16 %v604, %v600
        %v825 = vpack.c.b16 %v605, %v601
        %v826 = vpack.c.b16 %v610, %v606
        %v827 = vpack.c.b16 %v611, %v607
        %v828 = vpack.c.b16 %v612, %v608
        %v829 = vpack.c.b16 %v613, %v609
        %v830 = vpack.c.b16 %v618, %v614
        %v831 = vpack.c.b16 %v619, %v615
        %v832 = vpack.c.b16 %v620, %v616
        %v833 = vpack.c.b16 %v621, %v617
        %v834 = vpack.c.b16 %v626, %v622
        %v835 = vpack.c.b16 %v627, %v623
        %v836 = vpack.c.b16 %v628, %v624
        %v837 = vpack.c.b16 %v629, %v625
        %v838 = vpack.c.b16 %v634, %v630
        %v839 = vpack.c.b16 %v635, %v631
        %v840 = vpack.c.b16 %v636, %v632
        %v841 = vpack.c.b16 %v637, %v633
        %v842 = vpack.c.b16 %v642, %v638
        %v843 = vpack.c.b16 %v643, %v639
        %v844 = vpack.c.b16 %v644, %v640
        %v845 = vpack.c.b16 %v645, %v641
        %v846 = vpack.c.b16 %v650, %v646
        %v847 = vpack.c.b16 %v651, %v647
        %v848 = vpack.c.b16 %v652, %v648
        %v849 = vpack.c.b16 %v653, %v649
        %v850 = vpack.c.b16 %v658, %v654
        %v851 = vpack.c.b16 %v659, %v655
        %v852 = vpack.c.b16 %v660, %v656
        %v853 = vpack.c.b16 %v661, %v657
        %v854 = vpack.c.b16 %v666, %v662
        %v855 = vpack.c.b16 %v667, %v663
        %v856 = vpack.c.b16 %v668, %v664
        %v857 = vpack.c.b16 %v669, %v665
        %v858 = vpack.c.b16 %v674, %v670
        %v859 = vpack.c.b16 %v675, %v671
        %v860 = vpack.c.b16 %v676, %v672
        %v861 = vpack.c.b16 %v677, %v673
        %v862 = vpack.c.b16 %v682, %v678
        %v863 = vpack.c.b16 %v683, %v679
        %v864 = vpack.c.b16 %v684, %v680
        %v865 = vpack.c.b16 %v685, %v681
        %v866 = vpack.c.b16 %v690, %v686
        %v867 = vpack.c.b16 %v691, %v687
        %v868 = vpack.c.b16 %v692, %v688
        %v869 = vpack.c.b16 %v693, %v689
        %v870 = vpack.c.b16 %v698, %v694
        %v871 = vpack.c.b16 %v699, %v695
        %v872 = vpack.c.b16 %v700, %v696
        %v873 = vpack.c.b16 %v701, %v697
        %v874 = vpack.c.b16 %v706, %v702
        %v875 = vpack.c.b16 %v707, %v703
        %v876 = vpack.c.b16 %v708, %v704
        %v877 = vpack.c.b16 %v709, %v705
        %v878 = vpack.c.b16 %v714, %v710
        %v879 = vpack.c.b16 %v715, %v711
        %v880 = vpack.c.b16 %v716, %v712
        %v881 = vpack.c.b16 %v717, %v713
        %v882 = vpack.c.b16 %v722, %v718
        %v883 = vpack.c.b16 %v723, %v719
        %v884 = vpack.c.b16 %v724, %v720
        %v885 = vpack.c.b16 %v725, %v721
        %v886 = vpack.c.b16 %v730, %v726
        %v887 = vpack.c.b16 %v731, %v727
        %v888 = vpack.c.b16 %v732, %v728
        %v889 = vpack.c.b16 %v733, %v729
        %v890 = vpack.c.b16 %v738, %v734
        %v891 = vpack.c.b16 %v739, %v735
        %v892 = vpack.c.b16 %v740, %v736
        %v893 = vpack.c.b16 %v741, %v737
        %v894 = vpack.c.b16 %v746, %v742
        %v895 = vpack.c.b16 %v747, %v743
        %v896 = vpack.c.b16 %v748, %v744
        %v897 = vpack.c.b16 %v749, %v745
        %v898 = vpack.c.b16 %v754, %v750
        %v899 = vpack.c.b16 %v755, %v751
        %v900 = vpack.c.b16 %v756, %v752
        %v901 = vpack.c.b16 %v757, %v753
        %v902 = vpack.c.b16 %v762, %v758
        %v903 = vpack.c.b16 %v763, %v759
        %v904 = vpack.c.b16 %v764, %v760
        %v905 = vpack.c.b16 %v765, %v761
        %v906 = vpack.c.b16 %v770, %v766
        %v907 = vpack.c.b16 %v771, %v767
        %v908 = vpack.c.b16 %v772, %v768
        %v909 = vpack.c.b16 %v773, %v769
        %v910 = vpack.c.b16 %v778, %v774
        %v911 = vpack.c.b16 %v779, %v775
        %v912 = vpack.c.b16 %v780, %v776
        %v913 = vpack.c.b16 %v781, %v777
        %v914 = vpack.c.b16 %v786, %v782
        %v915 = vpack.c.b16 %v787, %v783
        %v916 = vpack.c.b16 %v788, %v784
        %v917 = vpack.c.b16 %v789, %v785
        %v918 = vpack.c.b16 %v794, %v790
        %v919 = vpack.c.b16 %v795, %v791
        %v920 = vpack.c.b16 %v796, %v792
        %v921 = vpack.c.b16 %v797, %v793
        %v922 = vpack.c.b16 %v802, %v798
        %v923 = vpack.c.b16 %v803, %v799
        %v924 = vpack.c.b16 %v804, %v800
        %v925 = vpack.c.b16 %v805, %v801
        %v926 = vpack.c.b16 %v806, %v806
        %v927 = vpack.c.b16 %v807, %v807
        %v928 = vpack.c.b16 %v808, %v808
        %v929 = vpack.c.b16 %v809, %v809
        %vm1046 = vcmask 703488
        %v1048 = vsel %vm1046, %v323, 0
        %v1051 = vsel %vm1046, %v327, 0
        %vm1053 = vcmask 1042432
        %v1055 = vsel %vm1053, %v926, 0
        %v1058 = vsel %vm1053, %v927, 0
        %v1061 = vsel %vm1053, %v928, 0
        %v1064 = vsel %vm1053, %v929, 0
        %1066 = vmatpush.bf16.msra.mxu0 %v838
        %1067 = vmatpush.bf16.msra.mxu0 %v834
        %1068 = vmatpush.bf16.msra.mxu0 %v830
        %1069 = vmatpush.bf16.msra.mxu0 %v826
        %1070 = vmatpush.bf16.msra.mxu0 %v822
        %1071 = vmatpush.bf16.msra.mxu0 %v818
        %1072 = vmatpush.bf16.msra.mxu0 %v814
        %1073 = vmatpush.bf16.msra.mxu0 %v810
        %1074 = vmatmul.bf16.gmra.mxu0 %v320
        %v1075 = vpop.f32.mrf.mxu0
        %v1076 = vadd.f32 %v448, %v1075
        %v1077 = vpop.f32.mrf.mxu0
        %v1078 = vadd.f32 %v448, %v1077
        %1079 = vmatmul.bf16.gmra.mxu0 %v324
        %v1080 = vpop.f32.mrf.mxu0
        %v1081 = vadd.f32 %v448, %v1080
        %v1082 = vpop.f32.mrf.mxu0
        %v1083 = vadd.f32 %v448, %v1082
        %1084 = vdwg.mxu0
        %1085 = vmatpush.bf16.msra.mxu0 %v870
        %1086 = vmatpush.bf16.msra.mxu0 %v866
        %1087 = vmatpush.bf16.msra.mxu0 %v862
        %1088 = vmatpush.bf16.msra.mxu0 %v858
        %1089 = vmatpush.bf16.msra.mxu0 %v854
        %1090 = vmatpush.bf16.msra.mxu0 %v850
        %1091 = vmatpush.bf16.msra.mxu0 %v846
        %1092 = vmatpush.bf16.msra.mxu0 %v842
        %1093 = vmatmul.bf16.gmra.mxu0 %v321
        %v1094 = vpop.f32.mrf.mxu0
        %v1095 = vadd.f32 %v1076, %v1094
        %v1096 = vpop.f32.mrf.mxu0
        %v1097 = vadd.f32 %v1078, %v1096
        %1098 = vmatmul.bf16.gmra.mxu0 %v325
        %v1099 = vpop.f32.mrf.mxu0
        %v1100 = vadd.f32 %v1081, %v1099
        %v1101 = vpop.f32.mrf.mxu0
        %v1102 = vadd.f32 %v1083, %v1101
        %1103 = vdwg.mxu0
        %1104 = vmatpush.bf16.msra.mxu0 %v902
        %1105 = vmatpush.bf16.msra.mxu0 %v898
        %1106 = vmatpush.bf16.msra.mxu0 %v894
        %1107 = vmatpush.bf16.msra.mxu0 %v890
        %1108 = vmatpush.bf16.msra.mxu0 %v886
        %1109 = vmatpush.bf16.msra.mxu0 %v882
        %1110 = vmatpush.bf16.msra.mxu0 %v878
        %1111 = vmatpush.bf16.msra.mxu0 %v874
        %1112 = vmatmul.bf16.gmra.mxu0 %v322
        %v1113 = vpop.f32.mrf.mxu0
        %v1114 = vadd.f32 %v1095, %v1113
        %v1115 = vpop.f32.mrf.mxu0
        %v1116 = vadd.f32 %v1097, %v1115
        %1117 = vmatmul.bf16.gmra.mxu0 %v326
        %v1118 = vpop.f32.mrf.mxu0
        %v1119 = vadd.f32 %v1100, %v1118
        %v1120 = vpop.f32.mrf.mxu0
        %v1121 = vadd.f32 %v1102, %v1120
        %1122 = vdwg.mxu0
        %1123 = vmatpush.bf16.msra.mxu0 0
        %1124 = vmatpush.bf16.msra.mxu0 0
        %1125 = vmatpush.bf16.msra.mxu0 %v1055
        %1126 = vmatpush.bf16.msra.mxu0 %v922
        %1127 = vmatpush.bf16.msra.mxu0 %v918
        %1128 = vmatpush.bf16.msra.mxu0 %v914
        %1129 = vmatpush.bf16.msra.mxu0 %v910
        %1130 = vmatpush.bf16.msra.mxu0 %v906
        %1131 = vmatmul.bf16.gmra.mxu0 %v1048
        %v1132 = vpop.f32.mrf.mxu0
        %v1133 = vadd.f32 %v1114, %v1132
        %v1134 = vpop.f32.mrf.mxu0
        %v1135 = vadd.f32 %v1116, %v1134
        %1136 = vmatmul.bf16.gmra.mxu0 %v1051
        %v1137 = vpop.f32.mrf.mxu0
        %v1138 = vadd.f32 %v1119, %v1137
        %v1139 = vpop.f32.mrf.mxu0
        %v1140 = vadd.f32 %v1121, %v1139
        %1141 = vdwg.mxu0
        %1142 = vmatpush.bf16.msra.mxu0 %v839
        %1143 = vmatpush.bf16.msra.mxu0 %v835
        %1144 = vmatpush.bf16.msra.mxu0 %v831
        %1145 = vmatpush.bf16.msra.mxu0 %v827
        %1146 = vmatpush.bf16.msra.mxu0 %v823
        %1147 = vmatpush.bf16.msra.mxu0 %v819
        %1148 = vmatpush.bf16.msra.mxu0 %v815
        %1149 = vmatpush.bf16.msra.mxu0 %v811
        %1150 = vmatmul.bf16.gmra.mxu0 %v320
        %v1151 = vpop.f32.mrf.mxu0
        %v1152 = vadd.f32 %v449, %v1151
        %v1153 = vpop.f32.mrf.mxu0
        %v1154 = vadd.f32 %v449, %v1153
        %1155 = vmatmul.bf16.gmra.mxu0 %v324
        %v1156 = vpop.f32.mrf.mxu0
        %v1157 = vadd.f32 %v449, %v1156
        %v1158 = vpop.f32.mrf.mxu0
        %v1159 = vadd.f32 %v449, %v1158
        %1160 = vdwg.mxu0
        %1161 = vmatpush.bf16.msra.mxu0 %v871
        %1162 = vmatpush.bf16.msra.mxu0 %v867
        %1163 = vmatpush.bf16.msra.mxu0 %v863
        %1164 = vmatpush.bf16.msra.mxu0 %v859
        %1165 = vmatpush.bf16.msra.mxu0 %v855
        %1166 = vmatpush.bf16.msra.mxu0 %v851
        %1167 = vmatpush.bf16.msra.mxu0 %v847
        %1168 = vmatpush.bf16.msra.mxu0 %v843
        %1169 = vmatmul.bf16.gmra.mxu0 %v321
        %v1170 = vpop.f32.mrf.mxu0
        %v1171 = vadd.f32 %v1152, %v1170
        %v1172 = vpop.f32.mrf.mxu0
        %v1173 = vadd.f32 %v1154, %v1172
        %1174 = vmatmul.bf16.gmra.mxu0 %v325
        %v1175 = vpop.f32.mrf.mxu0
        %v1176 = vadd.f32 %v1157, %v1175
        %v1177 = vpop.f32.mrf.mxu0
        %v1178 = vadd.f32 %v1159, %v1177
        %1179 = vdwg.mxu0
        %1180 = vmatpush.bf16.msra.mxu0 %v903
        %1181 = vmatpush.bf16.msra.mxu0 %v899
        %1182 = vmatpush.bf16.msra.mxu0 %v895
        %1183 = vmatpush.bf16.msra.mxu0 %v891
        %1184 = vmatpush.bf16.msra.mxu0 %v887
        %1185 = vmatpush.bf16.msra.mxu0 %v883
        %1186 = vmatpush.bf16.msra.mxu0 %v879
        %1187 = vmatpush.bf16.msra.mxu0 %v875
        %1188 = vmatmul.bf16.gmra.mxu0 %v322
        %v1189 = vpop.f32.mrf.mxu0
        %v1190 = vadd.f32 %v1171, %v1189
        %v1191 = vpop.f32.mrf.mxu0
        %v1192 = vadd.f32 %v1173, %v1191
        %1193 = vmatmul.bf16.gmra.mxu0 %v326
        %v1194 = vpop.f32.mrf.mxu0
        %v1195 = vadd.f32 %v1176, %v1194
        %v1196 = vpop.f32.mrf.mxu0
        %v1197 = vadd.f32 %v1178, %v1196
        %1198 = vdwg.mxu0
        %1199 = vmatpush.bf16.msra.mxu0 0
        %1200 = vmatpush.bf16.msra.mxu0 0
        %1201 = vmatpush.bf16.msra.mxu0 %v1058
        %1202 = vmatpush.bf16.msra.mxu0 %v923
        %1203 = vmatpush.bf16.msra.mxu0 %v919
        %1204 = vmatpush.bf16.msra.mxu0 %v915
        %1205 = vmatpush.bf16.msra.mxu0 %v911
        %1206 = vmatpush.bf16.msra.mxu0 %v907
        %1207 = vmatmul.bf16.gmra.mxu0 %v1048
        %v1208 = vpop.f32.mrf.mxu0
        %v1209 = vadd.f32 %v1190, %v1208
        %v1210 = vpop.f32.mrf.mxu0
        %v1211 = vadd.f32 %v1192, %v1210
        %1212 = vmatmul.bf16.gmra.mxu0 %v1051
        %v1213 = vpop.f32.mrf.mxu0
        %v1214 = vadd.f32 %v1195, %v1213
        %v1215 = vpop.f32.mrf.mxu0
        %v1216 = vadd.f32 %v1197, %v1215
        %1217 = vdwg.mxu0
        %1218 = vmatpush.bf16.msra.mxu0 %v840
        %1219 = vmatpush.bf16.msra.mxu0 %v836
        %1220 = vmatpush.bf16.msra.mxu0 %v832
        %1221 = vmatpush.bf16.msra.mxu0 %v828
        %1222 = vmatpush.bf16.msra.mxu0 %v824
        %1223 = vmatpush.bf16.msra.mxu0 %v820
        %1224 = vmatpush.bf16.msra.mxu0 %v816
        %1225 = vmatpush.bf16.msra.mxu0 %v812
        %1226 = vmatmul.bf16.gmra.mxu0 %v320
        %v1227 = vpop.f32.mrf.mxu0
        %v1228 = vadd.f32 %v450, %v1227
        %v1229 = vpop.f32.mrf.mxu0
        %v1230 = vadd.f32 %v450, %v1229
        %1231 = vmatmul.bf16.gmra.mxu0 %v324
        %v1232 = vpop.f32.mrf.mxu0
        %v1233 = vadd.f32 %v450, %v1232
        %v1234 = vpop.f32.mrf.mxu0
        %v1235 = vadd.f32 %v450, %v1234
        %1236 = vdwg.mxu0
        %1237 = vmatpush.bf16.msra.mxu0 %v872
        %1238 = vmatpush.bf16.msra.mxu0 %v868
        %1239 = vmatpush.bf16.msra.mxu0 %v864
        %1240 = vmatpush.bf16.msra.mxu0 %v860
        %1241 = vmatpush.bf16.msra.mxu0 %v856
        %1242 = vmatpush.bf16.msra.mxu0 %v852
        %1243 = vmatpush.bf16.msra.mxu0 %v848
        %1244 = vmatpush.bf16.msra.mxu0 %v844
        %1245 = vmatmul.bf16.gmra.mxu0 %v321
        %v1246 = vpop.f32.mrf.mxu0
        %v1247 = vadd.f32 %v1228, %v1246
        %v1248 = vpop.f32.mrf.mxu0
        %v1249 = vadd.f32 %v1230, %v1248
        %1250 = vmatmul.bf16.gmra.mxu0 %v325
        %v1251 = vpop.f32.mrf.mxu0
        %v1252 = vadd.f32 %v1233, %v1251
        %v1253 = vpop.f32.mrf.mxu0
        %v1254 = vadd.f32 %v1235, %v1253
        %1255 = vdwg.mxu0
        %1256 = vmatpush.bf16.msra.mxu0 %v904
        %1257 = vmatpush.bf16.msra.mxu0 %v900
        %1258 = vmatpush.bf16.msra.mxu0 %v896
        %1259 = vmatpush.bf16.msra.mxu0 %v892
        %1260 = vmatpush.bf16.msra.mxu0 %v888
        %1261 = vmatpush.bf16.msra.mxu0 %v884
        %1262 = vmatpush.bf16.msra.mxu0 %v880
        %1263 = vmatpush.bf16.msra.mxu0 %v876
        %1264 = vmatmul.bf16.gmra.mxu0 %v322
        %v1265 = vpop.f32.mrf.mxu0
        %v1266 = vadd.f32 %v1247, %v1265
        %v1267 = vpop.f32.mrf.mxu0
        %v1268 = vadd.f32 %v1249, %v1267
        %1269 = vmatmul.bf16.gmra.mxu0 %v326
        %v1270 = vpop.f32.mrf.mxu0
        %v1271 = vadd.f32 %v1252, %v1270
        %v1272 = vpop.f32.mrf.mxu0
        %v1273 = vadd.f32 %v1254, %v1272
        %1274 = vdwg.mxu0
        %1275 = vmatpush.bf16.msra.mxu0 0
        %1276 = vmatpush.bf16.msra.mxu0 0
        %1277 = vmatpush.bf16.msra.mxu0 %v1061
        %1278 = vmatpush.bf16.msra.mxu0 %v924
        %1279 = vmatpush.bf16.msra.mxu0 %v920
        %1280 = vmatpush.bf16.msra.mxu0 %v916
        %1281 = vmatpush.bf16.msra.mxu0 %v912
        %1282 = vmatpush.bf16.msra.mxu0 %v908
        %1283 = vmatmul.bf16.gmra.mxu0 %v1048
        %v1284 = vpop.f32.mrf.mxu0
        %v1285 = vadd.f32 %v1266, %v1284
        %v1286 = vpop.f32.mrf.mxu0
        %v1287 = vadd.f32 %v1268, %v1286
        %1288 = vmatmul.bf16.gmra.mxu0 %v1051
        %v1289 = vpop.f32.mrf.mxu0
        %v1290 = vadd.f32 %v1271, %v1289
        %v1291 = vpop.f32.mrf.mxu0
        %v1292 = vadd.f32 %v1273, %v1291
        %1293 = vdwg.mxu0
        %1294 = vmatpush.bf16.msra.mxu0 %v841
        %1295 = vmatpush.bf16.msra.mxu0 %v837
        %1296 = vmatpush.bf16.msra.mxu0 %v833
        %1297 = vmatpush.bf16.msra.mxu0 %v829
        %1298 = vmatpush.bf16.msra.mxu0 %v825
        %1299 = vmatpush.bf16.msra.mxu0 %v821
        %1300 = vmatpush.bf16.msra.mxu0 %v817
        %1301 = vmatpush.bf16.msra.mxu0 %v813
        %1302 = vmatmul.bf16.gmra.mxu0 %v320
        %v1303 = vpop.f32.mrf.mxu0
        %v1304 = vadd.f32 %v451, %v1303
        %v1305 = vpop.f32.mrf.mxu0
        %v1306 = vadd.f32 %v451, %v1305
        %1307 = vmatmul.bf16.gmra.mxu0 %v324
        %v1308 = vpop.f32.mrf.mxu0
        %v1309 = vadd.f32 %v451, %v1308
        %v1310 = vpop.f32.mrf.mxu0
        %v1311 = vadd.f32 %v451, %v1310
        %1312 = vdwg.mxu0
        %1313 = vmatpush.bf16.msra.mxu0 %v873
        %1314 = vmatpush.bf16.msra.mxu0 %v869
        %1315 = vmatpush.bf16.msra.mxu0 %v865
        %1316 = vmatpush.bf16.msra.mxu0 %v861
        %1317 = vmatpush.bf16.msra.mxu0 %v857
        %1318 = vmatpush.bf16.msra.mxu0 %v853
        %1319 = vmatpush.bf16.msra.mxu0 %v849
        %1320 = vmatpush.bf16.msra.mxu0 %v845
        %1321 = vmatmul.bf16.gmra.mxu0 %v321
        %v1322 = vpop.f32.mrf.mxu0
        %v1323 = vadd.f32 %v1304, %v1322
        %v1324 = vpop.f32.mrf.mxu0
        %v1325 = vadd.f32 %v1306, %v1324
        %1326 = vmatmul.bf16.gmra.mxu0 %v325
        %v1327 = vpop.f32.mrf.mxu0
        %v1328 = vadd.f32 %v1309, %v1327
        %v1329 = vpop.f32.mrf.mxu0
        %v1330 = vadd.f32 %v1311, %v1329
        %1331 = vdwg.mxu0
        %1332 = vmatpush.bf16.msra.mxu0 %v905
        %1333 = vmatpush.bf16.msra.mxu0 %v901
        %1334 = vmatpush.bf16.msra.mxu0 %v897
        %1335 = vmatpush.bf16.msra.mxu0 %v893
        %1336 = vmatpush.bf16.msra.mxu0 %v889
        %1337 = vmatpush.bf16.msra.mxu0 %v885
        %1338 = vmatpush.bf16.msra.mxu0 %v881
        %1339 = vmatpush.bf16.msra.mxu0 %v877
        %1340 = vmatmul.bf16.gmra.mxu0 %v322
        %v1341 = vpop.f32.mrf.mxu0
        %v1342 = vadd.f32 %v1323, %v1341
        %v1343 = vpop.f32.mrf.mxu0
        %v1344 = vadd.f32 %v1325, %v1343
        %1345 = vmatmul.bf16.gmra.mxu0 %v326
        %v1346 = vpop.f32.mrf.mxu0
        %v1347 = vadd.f32 %v1328, %v1346
        %v1348 = vpop.f32.mrf.mxu0
        %v1349 = vadd.f32 %v1330, %v1348
        %1350 = vdwg.mxu0
        %1351 = vmatpush.bf16.msra.mxu0 0
        %1352 = vmatpush.bf16.msra.mxu0 0
        %1353 = vmatpush.bf16.msra.mxu0 %v1064
        %1354 = vmatpush.bf16.msra.mxu0 %v925
        %1355 = vmatpush.bf16.msra.mxu0 %v921
        %1356 = vmatpush.bf16.msra.mxu0 %v917
        %1357 = vmatpush.bf16.msra.mxu0 %v913
        %1358 = vmatpush.bf16.msra.mxu0 %v909
        %1359 = vmatmul.bf16.gmra.mxu0 %v1048
        %v1360 = vpop.f32.mrf.mxu0
        %v1361 = vadd.f32 %v1342, %v1360
        %v1362 = vpop.f32.mrf.mxu0
        %v1363 = vadd.f32 %v1344, %v1362
        %1364 = vmatmul.bf16.gmra.mxu0 %v1051
        %v1365 = vpop.f32.mrf.mxu0
        %v1366 = vadd.f32 %v1347, %v1365
        %v1367 = vpop.f32.mrf.mxu0
        %v1368 = vadd.f32 %v1349, %v1367
        %1369 = vdwg.mxu0
        %v1370 = vmax.f32 %v1133, 0.0
        %v1371 = vmax.f32 %v1209, 0.0
        %v1372 = vmax.f32 %v1285, 0.0
        %v1373 = vmax.f32 %v1361, 0.0
        %v1374 = vmax.f32 %v1135, 0.0
        %v1375 = vmax.f32 %v1211, 0.0
        %v1376 = vmax.f32 %v1287, 0.0
        %v1377 = vmax.f32 %v1363, 0.0
        %v1378 = vmax.f32 %v1138, 0.0
        %v1379 = vmax.f32 %v1214, 0.0
        %v1380 = vmax.f32 %v1290, 0.0
        %v1381 = vmax.f32 %v1366, 0.0
        %v1382 = vmax.f32 %v1140, 0.0
        %v1383 = vmax.f32 %v1216, 0.0
        %v1384 = vmax.f32 %v1292, 0.0
        %v1385 = vmax.f32 %v1368, 0.0
        %v1386 = vpack.c.bf16 %v1374, %v1370
        %v1387 = vpack.c.bf16 %v1375, %v1371
        %v1388 = vpack.c.bf16 %v1376, %v1372
        %v1389 = vpack.c.bf16 %v1377, %v1373
        %v1390 = vpack.c.bf16 %v1382, %v1378
        %v1391 = vpack.c.bf16 %v1383, %v1379
        %v1392 = vpack.c.bf16 %v1384, %v1380
        %v1393 = vpack.c.bf16 %v1385, %v1381
        %v1394 = vld [vmem:[%s3] sm:$0xf]
        %v1395 = vld [vmem:[%s3 + $0x4] sm:$0xf]
        %v1396 = vld [vmem:[%s3 + $0x8] sm:$0xf]
        %v1397 = vld [vmem:[%s3 + $0xc] sm:$0xf]
        %v1398 = vld [vmem:[%s3 + $0x10] sm:$0xf]
        %v1399 = vld [vmem:[%s3 + $0x14] sm:$0xf]
        %v1400 = vld [vmem:[%s3 + $0x18] sm:$0xf]
        %v1401 = vld [vmem:[%s3 + $0x1c] sm:$0xf]
        %v1402 = vld [vmem:[%s3 + $0x20] sm:$0xf]
        %v1403 = vld [vmem:[%s3 + $0x24] sm:$0xf]
        %v1404 = vld [vmem:[%s3 + $0x28] sm:$0xf]
        %v1405 = vld [vmem:[%s3 + $0x2c] sm:$0xf]
        %v1406 = vld [vmem:[%s3 + $0x30] sm:$0xf]
        %v1407 = vld [vmem:[%s3 + $0x34] sm:$0xf]
        %v1408 = vld [vmem:[%s3 + $0x38] sm:$0xf]
        %v1409 = vld [vmem:[%s3 + $0x3c] sm:$0xf]
        %v1410 = vld [vmem:[%s3 + $0x40] sm:$0xf]
        %v1411 = vld [vmem:[%s3 + $0x44] sm:$0xf]
        %v1412 = vld [vmem:[%s3 + $0x48] sm:$0xf]
        %v1413 = vld [vmem:[%s3 + $0x4c] sm:$0xf]
        %v1414 = vld [vmem:[%s3 + $0x50] sm:$0xf]
        %v1415 = vld [vmem:[%s3 + $0x54] sm:$0xf]
        %v1416 = vld [vmem:[%s3 + $0x58] sm:$0xf]
        %v1417 = vld [vmem:[%s3 + $0x5c] sm:$0xf]
        %v1418 = vld [vmem:[%s3 + $0x60] sm:$0xf]
        %v1419 = vld [vmem:[%s3 + $0x64] sm:$0xf]
        %v1420 = vld [vmem:[%s3 + $0x68] sm:$0xf]
        %v1421 = vld [vmem:[%s3 + $0x6c] sm:$0xf]
        %v1422 = vld [vmem:[%s3 + $0x70] sm:$0xf]
        %v1423 = vld [vmem:[%s3 + $0x74] sm:$0xf]
        %v1424 = vld [vmem:[%s3 + $0x78] sm:$0xf]
        %v1425 = vld [vmem:[%s3 + $0x7c] sm:$0xf]
        %v1426 = vld [vmem:[%s3 + $0x80] sm:$0xf]
        %v1427 = vld [vmem:[%s3 + $0x84] sm:$0xf]
        %v1428 = vld [vmem:[%s3 + $0x88] sm:$0xf]
        %v1429 = vld [vmem:[%s3 + $0x8c] sm:$0xf]
        %v1430 = vld [vmem:[%s3 + $0x90] sm:$0xf]
        %v1431 = vld [vmem:[%s3 + $0x94] sm:$0xf]
        %v1432 = vld [vmem:[%s3 + $0x98] sm:$0xf]
        %v1433 = vld [vmem:[%s3 + $0x9c] sm:$0xf]
        %v1434 = vld [vmem:[%s3 + $0xa0] sm:$0xf]
        %v1435 = vld [vmem:[%s3 + $0xa4] sm:$0xf]
        %v1436 = vld [vmem:[%s3 + $0xa8] sm:$0xf]
        %v1437 = vld [vmem:[%s3 + $0xac] sm:$0xf]
        %v1438 = vld [vmem:[%s3 + $0xb0] sm:$0xf]
        %v1439 = vld [vmem:[%s3 + $0xb4] sm:$0xf]
        %v1440 = vld [vmem:[%s3 + $0xb8] sm:$0xf]
        %v1441 = vld [vmem:[%s3 + $0xbc] sm:$0xf]
        %v1442 = vld [vmem:[%s3 + $0xc0] sm:$0xf]
        %v1443 = vld [vmem:[%s3 + $0xc4] sm:$0xf]
        %v1444 = vld [vmem:[%s3 + $0xc8] sm:$0xf]
        %v1445 = vld [vmem:[%s3 + $0xcc] sm:$0xf]
        %v1446 = vld [vmem:[%s3 + $0xd0] sm:$0xf]
        %v1447 = vld [vmem:[%s3 + $0xd4] sm:$0xf]
        %v1448 = vld [vmem:[%s3 + $0xd8] sm:$0xf]
        %v1449 = vld [vmem:[%s3 + $0xdc] sm:$0xf]
        %v1450 = vld [vmem:[%s3 + $0xe0] sm:$0xf]
        %v1451 = vld [vmem:[%s3 + $0xe4] sm:$0xf]
        %v1452 = vld [vmem:[%s3 + $0xe8] sm:$0xf]
        %v1453 = vld [vmem:[%s3 + $0xec] sm:$0xf]
        %v1454 = vld [vmem:[%s3 + $0xf0] sm:$0xf]
        %v1455 = vld [vmem:[%s3 + $0xf4] sm:$0xf]
        %v1456 = vld [vmem:[%s3 + $0xf8] sm:$0xf]
        %v1457 = vld [vmem:[%s3 + $0xfc] sm:$0xf]
        %v1458 = vld [vmem:[%s4] sm:$0x1]
        %v1460 = vperm.slane %v1458, 0
        %v1526 = vunpack.c.l.b16 %v1394
        %v1527 = vunpack.c.l.b16 %v1395
        %v1528 = vunpack.c.l.b16 %v1396
        %v1529 = vunpack.c.l.b16 %v1397
        %v1530 = vunpack.c.l.b16 %v1398
        %v1531 = vunpack.c.l.b16 %v1399
        %v1532 = vunpack.c.l.b16 %v1400
        %v1533 = vunpack.c.l.b16 %v1401
        %v1534 = vunpack.c.l.b16 %v1402
        %v1535 = vunpack.c.l.b16 %v1403
        %v1536 = vunpack.c.l.b16 %v1404
        %v1537 = vunpack.c.l.b16 %v1405
        %v1538 = vunpack.c.l.b16 %v1406
        %v1539 = vunpack.c.l.b16 %v1407
        %v1540 = vunpack.c.l.b16 %v1408
        %v1541 = vunpack.c.l.b16 %v1409
        %v1542 = vunpack.c.l.b16 %v1410
        %v1543 = vunpack.c.l.b16 %v1411
        %v1544 = vunpack.c.l.b16 %v1412
        %v1545 = vunpack.c.l.b16 %v1413
        %v1546 = vunpack.c.l.b16 %v1414
        %v1547 = vunpack.c.l.b16 %v1415
        %v1548 = vunpack.c.l.b16 %v1416
        %v1549 = vunpack.c.l.b16 %v1417
        %v1550 = vunpack.c.l.b16 %v1418
        %v1551 = vunpack.c.l.b16 %v1419
        %v1552 = vunpack.c.l.b16 %v1420
        %v1553 = vunpack.c.l.b16 %v1421
        %v1554 = vunpack.c.l.b16 %v1422
        %v1555 = vunpack.c.l.b16 %v1423
        %v1556 = vunpack.c.l.b16 %v1424
        %v1557 = vunpack.c.l.b16 %v1425
        %v1558 = vunpack.c.l.b16 %v1426
        %v1559 = vunpack.c.l.b16 %v1427
        %v1560 = vunpack.c.l.b16 %v1428
        %v1561 = vunpack.c.l.b16 %v1429
        %v1562 = vunpack.c.l.b16 %v1430
        %v1563 = vunpack.c.l.b16 %v1431
        %v1564 = vunpack.c.l.b16 %v1432
        %v1565 = vunpack.c.l.b16 %v1433
        %v1566 = vunpack.c.l.b16 %v1434
        %v1567 = vunpack.c.l.b16 %v1435
        %v1568 = vunpack.c.l.b16 %v1436
        %v1569 = vunpack.c.l.b16 %v1437
        %v1570 = vunpack.c.l.b16 %v1438
        %v1571 = vunpack.c.l.b16 %v1439
        %v1572 = vunpack.c.l.b16 %v1440
        %v1573 = vunpack.c.l.b16 %v1441
        %v1574 = vunpack.c.l.b16 %v1442
        %v1575 = vunpack.c.l.b16 %v1443
        %v1576 = vunpack.c.l.b16 %v1444
        %v1577 = vunpack.c.l.b16 %v1445
        %v1578 = vunpack.c.l.b16 %v1446
        %v1579 = vunpack.c.l.b16 %v1447
        %v1580 = vunpack.c.l.b16 %v1448
        %v1581 = vunpack.c.l.b16 %v1449
        %v1582 = vunpack.c.l.b16 %v1450
        %v1583 = vunpack.c.l.b16 %v1451
        %v1584 = vunpack.c.l.b16 %v1452
        %v1585 = vunpack.c.l.b16 %v1453
        %v1586 = vunpack.c.l.b16 %v1454
        %v1587 = vunpack.c.l.b16 %v1455
        %v1588 = vunpack.c.l.b16 %v1456
        %v1589 = vunpack.c.l.b16 %v1457
        %v1590 = vpack.c.b16 %v1527, %v1526
        %v1591 = vpack.c.b16 %v1529, %v1528
        %v1592 = vpack.c.b16 %v1531, %v1530
        %v1593 = vpack.c.b16 %v1533, %v1532
        %v1594 = vpack.c.b16 %v1535, %v1534
        %v1595 = vpack.c.b16 %v1537, %v1536
        %v1596 = vpack.c.b16 %v1539, %v1538
        %v1597 = vpack.c.b16 %v1541, %v1540
        %v1598 = vpack.c.b16 %v1543, %v1542
        %v1599 = vpack.c.b16 %v1545, %v1544
        %v1600 = vpack.c.b16 %v1547, %v1546
        %v1601 = vpack.c.b16 %v1549, %v1548
        %v1602 = vpack.c.b16 %v1551, %v1550
        %v1603 = vpack.c.b16 %v1553, %v1552
        %v1604 = vpack.c.b16 %v1555, %v1554
        %v1605 = vpack.c.b16 %v1557, %v1556
        %v1606 = vpack.c.b16 %v1559, %v1558
        %v1607 = vpack.c.b16 %v1561, %v1560
        %v1608 = vpack.c.b16 %v1563, %v1562
        %v1609 = vpack.c.b16 %v1565, %v1564
        %v1610 = vpack.c.b16 %v1567, %v1566
        %v1611 = vpack.c.b16 %v1569, %v1568
        %v1612 = vpack.c.b16 %v1571, %v1570
        %v1613 = vpack.c.b16 %v1573, %v1572
        %v1614 = vpack.c.b16 %v1575, %v1574
        %v1615 = vpack.c.b16 %v1577, %v1576
        %v1616 = vpack.c.b16 %v1579, %v1578
        %v1617 = vpack.c.b16 %v1581, %v1580
        %v1618 = vpack.c.b16 %v1583, %v1582
        %v1619 = vpack.c.b16 %v1585, %v1584
        %v1620 = vpack.c.b16 %v1587, %v1586
        %v1621 = vpack.c.b16 %v1589, %v1588
        %1654 = vmatpush.bf16.msra.mxu0 %v1597
        %1655 = vmatpush.bf16.msra.mxu0 %v1596
        %1656 = vmatpush.bf16.msra.mxu0 %v1595
        %1657 = vmatpush.bf16.msra.mxu0 %v1594
        %1658 = vmatpush.bf16.msra.mxu0 %v1593
        %1659 = vmatpush.bf16.msra.mxu0 %v1592
        %1660 = vmatpush.bf16.msra.mxu0 %v1591
        %1661 = vmatpush.bf16.msra.mxu0 %v1590
        %1662 = vmatmul.bf16.gmra.mxu0 %v1386
        %v1663 = vpop.f32.mrf.mxu0
        %v1664 = vadd.f32 %v1460, %v1663
        %v1665 = vpop.f32.mrf.mxu0
        %v1666 = vadd.f32 %v1460, %v1665
        %1667 = vmatmul.bf16.gmra.mxu0 %v1390
        %v1668 = vpop.f32.mrf.mxu0
        %v1669 = vadd.f32 %v1460, %v1668
        %v1670 = vpop.f32.mrf.mxu0
        %v1671 = vadd.f32 %v1460, %v1670
        %1672 = vdwg.mxu0
        %1673 = vmatpush.bf16.msra.mxu0 %v1605
        %1674 = vmatpush.bf16.msra.mxu0 %v1604
        %1675 = vmatpush.bf16.msra.mxu0 %v1603
        %1676 = vmatpush.bf16.msra.mxu0 %v1602
        %1677 = vmatpush.bf16.msra.mxu0 %v1601
        %1678 = vmatpush.bf16.msra.mxu0 %v1600
        %1679 = vmatpush.bf16.msra.mxu0 %v1599
        %1680 = vmatpush.bf16.msra.mxu0 %v1598
        %1681 = vmatmul.bf16.gmra.mxu0 %v1387
        %v1682 = vpop.f32.mrf.mxu0
        %v1683 = vadd.f32 %v1664, %v1682
        %v1684 = vpop.f32.mrf.mxu0
        %v1685 = vadd.f32 %v1666, %v1684
        %1686 = vmatmul.bf16.gmra.mxu0 %v1391
        %v1687 = vpop.f32.mrf.mxu0
        %v1688 = vadd.f32 %v1669, %v1687
        %v1689 = vpop.f32.mrf.mxu0
        %v1690 = vadd.f32 %v1671, %v1689
        %1691 = vdwg.mxu0
        %1692 = vmatpush.bf16.msra.mxu0 %v1613
        %1693 = vmatpush.bf16.msra.mxu0 %v1612
        %1694 = vmatpush.bf16.msra.mxu0 %v1611
        %1695 = vmatpush.bf16.msra.mxu0 %v1610
        %1696 = vmatpush.bf16.msra.mxu0 %v1609
        %1697 = vmatpush.bf16.msra.mxu0 %v1608
        %1698 = vmatpush.bf16.msra.mxu0 %v1607
        %1699 = vmatpush.bf16.msra.mxu0 %v1606
        %1700 = vmatmul.bf16.gmra.mxu0 %v1388
        %v1701 = vpop.f32.mrf.mxu0
        %v1702 = vadd.f32 %v1683, %v1701
        %v1703 = vpop.f32.mrf.mxu0
        %v1704 = vadd.f32 %v1685, %v1703
        %1705 = vmatmul.bf16.gmra.mxu0 %v1392
        %v1706 = vpop.f32.mrf.mxu0
        %v1707 = vadd.f32 %v1688, %v1706
        %v1708 = vpop.f32.mrf.mxu0
        %v1709 = vadd.f32 %v1690, %v1708
        %1710 = vdwg.mxu0
        %1711 = vmatpush.bf16.msra.mxu0 %v1621
        %1712 = vmatpush.bf16.msra.mxu0 %v1620
        %1713 = vmatpush.bf16.msra.mxu0 %v1619
        %1714 = vmatpush.bf16.msra.mxu0 %v1618
        %1715 = vmatpush.bf16.msra.mxu0 %v1617
        %1716 = vmatpush.bf16.msra.mxu0 %v1616
        %1717 = vmatpush.bf16.msra.mxu0 %v1615
        %1718 = vmatpush.bf16.msra.mxu0 %v1614
        %1719 = vmatmul.bf16.gmra.mxu0 %v1389
        %v1720 = vpop.f32.mrf.mxu0
        %v1721 = vadd.f32 %v1702, %v1720
        %v1722 = vpop.f32.mrf.mxu0
        %v1723 = vadd.f32 %v1704, %v1722
        %1724 = vmatmul.bf16.gmra.mxu0 %v1393
        %v1725 = vpop.f32.mrf.mxu0
        %v1726 = vadd.f32 %v1707, %v1725
        %v1727 = vpop.f32.mrf.mxu0
        %v1728 = vadd.f32 %v1709, %v1727
        %1729 = vdwg.mxu0
        %v1730 = vmax.f32 %v1721, 0.0
        %v1731 = vmax.f32 %v1723, 0.0
        %v1732 = vmax.f32 %v1726, 0.0
        %v1733 = vmax.f32 %v1728, 0.0
        %v1734 = vld [vmem:[%s5] sm:$0x1]
        %v1736 = vperm.slane %v1734, 0
        %v1738 = vmul.f32 %v1730, %v1736
        %v1739 = vmul.f32 %v1731, %v1736
        %v1740 = vmul.f32 %v1732, %v1736
        %v1741 = vmul.f32 %v1733, %v1736
        %vm1742 = vcmask 523264
        %v1743 = vsel %vm1742, %v1738, 0.0
        %1744 = vadd.xlane.f32.xlu0 %v1743
        %v1745 = vpop.xlane.xlu0 %1744
        %v1746 = vsel %vm1742, %v1739, 0.0
        %1747 = vadd.xlane.f32.xlu0 %v1746
        %v1748 = vpop.xlane.xlu0 %1747
        %v1749 = vsel %vm1742, %v1740, 0.0
        %1750 = vadd.xlane.f32.xlu0 %v1749
        %v1751 = vpop.xlane.xlu0 %1750
        %v1752 = vsel %vm1742, %v1741, 0.0
        %1753 = vadd.xlane.f32.xlu0 %v1752
        %v1754 = vpop.xlane.xlu0 %1753
        %s1755 = sld [smem:[#allocation2]]
        %v1756 = vstv %s1755
        %v1757 = vadd.f32 %v1745, %v1756
        %v1758 = vadd.f32 %v1748, %v1756
        %v1759 = vadd.f32 %v1751, %v1756
        %v1760 = vadd.f32 %v1754, %v1756
        %vm1761 = vcmask 7168
        %1762 = vst.msk [vmem:[%s301] sm:$0xff] %vm1761, %v1757
        %1763 = vst.msk [vmem:[%s301 + $0x8] sm:$0xff] %vm1761, %v1758
        %1764 = vst.msk [vmem:[%s301 + $0x10] sm:$0xff] %vm1761, %v1759
        %1765 = vst.msk [vmem:[%s301 + $0x18] sm:$0xff] %vm1761, %v1760
        %s1766 = smul.u32 4, %s20
        %p1767 = scmp.lt.s32.totalorder %s1766, 7
        %s1768 = scalar_select %p1767, %s1766, 7
        %s1769 = smul.addr %s1768, 8
        %s1770 = scalar_lea.vmem %s7, %s1769
        // Predicated region
        $region53: #{simple_linear_forward.1} parent=47 // pred_check
          %p1771 = pneg %p190
        $region54: #{simple_linear_forward.1} parent=47 // pred_check_branch
          %1773 = sbr.rel (%p1771) target = $region56
        $region55: #{simple_linear_forward.1} parent=47 // pred_region
          %s1774 = smul.u32 4, %s20
        $region56: #{simple_linear_forward.1} parent=47 // pred_fallthru
          _
      $region48: #{simple_linear_forward.1} parent=5 // pred_fallthru
        _
      %p1775 = scmp.le.s32.totalorder 2, %s15
      // Predicated region
      $region57: #{simple_linear_forward.1} parent=5 // pred_check
        %p1776 = pneg %p1775
      $region58: #{simple_linear_forward.1} parent=5 // pred_check_branch
        %1778 = sbr.rel (%p1776) target = $region60
      $region59: #{simple_linear_forward.1} parent=5 // pred_region
        %s1779 = ssub.s32 %s15, 2
        // Predicated region
        $region61: #{simple_linear_forward.1} parent=59 // pred_check
          %p1780 = pneg %p196
        $region62: #{simple_linear_forward.1} parent=59 // pred_check_branch
          %1782 = sbr.rel (%p1780) target = $region64
        $region63: #{simple_linear_forward.1} parent=59 // pred_region
          %s1783 = smul.u32 4, %s21
          %p1784 = scmp.lt.s32.totalorder %s1783, 7
          %s1785 = scalar_select %p1784, %s1783, 7
          %s1786 = smul.addr %s1785, 8
          %s1787 = scalar_lea.vmem %s7, %s1786
        $region64: #{simple_linear_forward.1} parent=59 // pred_fallthru
          _
      $region60: #{simple_linear_forward.1} parent=5 // pred_fallthru
        _
    $region6: #{simple_linear_forward.1} parent=1 // loop_footer
      %s19 = sadd.s32 1, %s15
    $region7: #{simple_linear_forward.1} parent=1 // loop_footer_branch
      %14 = sbr.rel target = $region3
    $region8: #{simple_linear_forward.1} parent=1 // loop_exit
      _
    %1788 = vsyncpa [#allocation4], 1
    %s1789 = scalar_lea.sflag [#allocation4], 1
    %1790 = vsyncpa %s1789, 1

</llo_original>
